<compile_context>
chip_gen: v7x
topology: tpu7x:2x2x1
jax: 0.10.0
libtpu: 0.0.40
codegen_flags: <defaults>
</compile_context>

<pallas_src>
import functools

import jax
import jax.numpy as jnp
from jax.experimental import pallas as pl
from jax.experimental.pallas import tpu as pltpu

EPS = 1e-5          # nn.InstanceNorm2d default
SLOPE = 0.2         # LeakyReLU negative slope


# ---------------------------------------------------------------------------
# Pallas kernels
# ---------------------------------------------------------------------------

def _matmul_in_lrelu_kernel(x_ref, w_ref, o_ref, *, eps, slope):
    """Fused (conv-as-matmul) -> InstanceNorm -> LeakyReLU for one batch sample.

    x_ref : (1, K, M)      im2col / zero-interleaved operand, M = spatial size
    w_ref : (C_out, K)     flattened conv / transposed-conv weights
    o_ref : (1, C_out, M)  lane-dense output (reshaped to NCHW by the wrapper)
    """
    x = x_ref[0]                                                   # (K, M)
    acc = jnp.dot(w_ref[...], x, preferred_element_type=jnp.float32)  # (C_out, M)

    # InstanceNorm2d (biased variance, no affine), per channel over the spatial axis.
    mean = jnp.mean(acc, axis=1, keepdims=True)
    cen = acc - mean
    var = jnp.mean(cen * cen, axis=1, keepdims=True)
    y = cen / jnp.sqrt(var + eps)

    # LeakyReLU(0.2).
    y = jnp.where(y >= 0.0, y, slope * y)
    o_ref[0] = y.astype(o_ref.dtype)


def _pool_matmul_kernel(x_ref, p_ref, o_ref):
    """AvgPool2d(2,2) as x_flat @ P for one batch sample.

    x_ref : (1, C, H*W), p_ref : (H*W, H*W/4), o_ref : (1, C, H*W/4)
    """
    o_ref[0] = jnp.dot(x_ref[0], p_ref[...],
                       preferred_element_type=jnp.float32).astype(o_ref.dtype)


# ---------------------------------------------------------------------------
# pallas_call wrappers
# ---------------------------------------------------------------------------

def _norm_act_matmul(x_cols, w_flat):
    """x_cols: (N, K, M) f32, w_flat: (C_out, K) f32 -> (N, C_out, M) f32."""
    n, k, m = x_cols.shape
    c_out = w_flat.shape[0]
    kern = functools.partial(_matmul_in_lrelu_kernel, eps=EPS, slope=SLOPE)
    return pl.pallas_call(
        kern,
        out_shape=jax.ShapeDtypeStruct((n, c_out, m), jnp.float32),
        grid_spec=pltpu.PrefetchScalarGridSpec(
            num_scalar_prefetch=0,
            grid=(n,),
            in_specs=[
                pl.BlockSpec((1, k, m), lambda b: (b, 0, 0)),
                pl.BlockSpec((c_out, k), lambda b: (0, 0)),
            ],
            out_specs=pl.BlockSpec((1, c_out, m), lambda b: (b, 0, 0)),
        ),
        compiler_params=pltpu.CompilerParams(
            dimension_semantics=("parallel",)),
    )(x_cols, w_flat)


def _avgpool_matmul(x_flat, pool_mat):
    """x_flat: (N, C, M) f32, pool_mat: (M, M/4) -> (N, C, M/4) f32."""
    n, c, m = x_flat.shape
    m_out = pool_mat.shape[1]
    return pl.pallas_call(
        _pool_matmul_kernel,
        out_shape=jax.ShapeDtypeStruct((n, c, m_out), jnp.float32),
        grid_spec=pltpu.PrefetchScalarGridSpec(
            num_scalar_prefetch=0,
            grid=(n,),
            in_specs=[
                pl.BlockSpec((1, c, m), lambda b: (b, 0, 0)),
                pl.BlockSpec((m, m_out), lambda b: (0, 0)),
            ],
            out_specs=pl.BlockSpec((1, c, m_out), lambda b: (b, 0, 0)),
        ),
        compiler_params=pltpu.CompilerParams(
            dimension_semantics=("parallel",)),
    )(x_flat, pool_mat)


# ---------------------------------------------------------------------------
# Wrapper glue (operand preparation; pure layout / gather work done by XLA)
# ---------------------------------------------------------------------------

def _im2col_3x3(x_nchw):
    """(N, C, H, W) -> (N, 9*C, H*W) with K index ordered (kh*3+kw)*C + c."""
    n, c, h, w = x_nchw.shape
    xp = jnp.pad(x_nchw, ((0, 0), (0, 0), (1, 1), (1, 1)))
    slabs = [xp[:, :, kh:kh + h, kw:kw + w]
             for kh in range(3) for kw in range(3)]
    cols = jnp.stack(slabs, axis=1)                     # (N, 9, C, H, W)
    return cols.reshape(n, 9 * c, h * w)


def _upsample_cols(x_nchw):
    """Zero-interleave for ConvTranspose2d(k=2, s=2):
    (N, C, H, W) -> (N, 4*C, (2H)*(2W)), K index (dh*2+dw)*C + c."""
    n, c, h, w = x_nchw.shape
    z = jnp.zeros((n, 2, 2, c, 2 * h, 2 * w), x_nchw.dtype)
    for dh in range(2):
        for dw in range(2):
            z = z.at[:, dh, dw, :, dh::2, dw::2].set(x_nchw)
    return z.reshape(n, 4 * c, 4 * h * w)


def _pool_matrix(h, w):
    """(H*W, (H/2)*(W/2)) matrix with 0.25 at [i*W+j, (i//2)*(W//2)+(j//2)]."""
    ii, jj = jnp.meshgrid(jnp.arange(h), jnp.arange(w), indexing="ij")
    rows = (ii * w + jj).reshape(-1)
    cols = ((ii // 2) * (w // 2) + (jj // 2)).reshape(-1)
    return jnp.zeros((h * w, (h // 2) * (w // 2)),
                     jnp.float32).at[rows, cols].set(0.25)


# ---------------------------------------------------------------------------
# Module-level building blocks (Pallas-backed)
# ---------------------------------------------------------------------------

def conv3x3_in_lrelu(x, w_oihw):
    """Conv2d(3x3, pad=1, no bias) -> InstanceNorm2d -> LeakyReLU(0.2)."""
    n, c, h, w = x.shape
    c_out = w_oihw.shape[0]
    cols = _im2col_3x3(x)
    w_flat = jnp.transpose(w_oihw, (0, 2, 3, 1)).reshape(c_out, 9 * c)
    out = _norm_act_matmul(cols, w_flat)                # (N, C_out, H*W)
    return out.reshape(n, c_out, h, w)


def conv_block(x, w1, w2):
    """ConvBlock: (Conv3x3 -> InstanceNorm -> LeakyReLU -> Dropout2d) x 2."""
    # TODO(synk): Dropout2d is identity here (drop_prob=0.0 / inference); train-mode
    # channel dropout is not implemented.
    return conv3x3_in_lrelu(conv3x3_in_lrelu(x, w1), w2)


def avg_pool_2x2(x):
    """AvgPool2d(kernel=2, stride=2, pad=0)."""
    n, c, h, w = x.shape
    pm = _pool_matrix(h, w)
    out = _avgpool_matmul(x.reshape(n, c, h * w), pm)
    return out.reshape(n, c, h // 2, w // 2)


def transpose_conv_block(x, wt_iohw):
    """TransposeConvBlock: ConvTranspose2d(2,2,s=2,no bias) -> InstanceNorm -> LeakyReLU."""
    n, c_in, h, w = x.shape
    c_out = wt_iohw.shape[1]
    cols = _upsample_cols(x)
    w_flat = jnp.transpose(wt_iohw, (1, 2, 3, 0)).reshape(c_out, 4 * c_in)
    out = _norm_act_matmul(cols, w_flat)                # (N, C_out, 4*H*W)
    return out.reshape(n, c_out, 2 * h, 2 * w)


def unet_level_forward(x, params):
    """Two-level UnetLevel: parent (with child) whose child is a leaf UnetLevel.

    parent.forward:  left_block -> cat(left, upsample(child(avgpool(left)))) -> right_block
    child (leaf).forward: left_block only.
    """
    left = conv_block(x, params["tl_w1"], params["tl_w2"])        # left_block
    down = avg_pool_2x2(left)                                     # downsample
    child = conv_block(down, params["ll_w1"], params["ll_w2"])    # child (leaf)
    up = transpose_conv_block(child, params["up_w"])              # upsample
    cat = jnp.concatenate([left, up], axis=1)                     # torch.cat(..., 1)
    return conv_block(cat, params["tr_w1"], params["tr_w2"])      # right_block


# ---------------------------------------------------------------------------
# Pure-JAX reference (mirrors the PyTorch module)
# ---------------------------------------------------------------------------

def _conv3x3_ref(x, w):
    return jax.lax.conv_general_dilated(
        x, w, window_strides=(1, 1), padding=((1, 1), (1, 1)),
        dimension_numbers=("NCHW", "OIHW", "NCHW"))


def _in_lrelu_ref(x):
    mean = jnp.mean(x, axis=(2, 3), keepdims=True)
    var = jnp.mean((x - mean) ** 2, axis=(2, 3), keepdims=True)
    y = (x - mean) / jnp.sqrt(var + EPS)
    return jnp.where(y >= 0.0, y, SLOPE * y)


def _conv_block_ref(x, w1, w2):
    x = _in_lrelu_ref(_conv3x3_ref(x, w1))
    return _in_lrelu_ref(_conv3x3_ref(x, w2))


def _avgpool_ref(x):
    n, c, h, w = x.shape
    return x.reshape(n, c, h // 2, 2, w // 2, 2).mean(axis=(3, 5))


def _tconv_ref(x, wt):
    n, c_in, h, w = x.shape
    c_out = wt.shape[1]
    out = jnp.zeros((n, c_out, 2 * h, 2 * w), x.dtype)
    for dh in range(2):
        for dw in range(2):
            piece = jnp.einsum("ncij,co->noij", x, wt[:, :, dh, dw])
            out = out.at[:, :, dh::2, dw::2].set(piece)
    return out


def _unet_ref(x, p):
    left = _conv_block_ref(x, p["tl_w1"], p["tl_w2"])
    down = _avgpool_ref(left)
    child = _conv_block_ref(down, p["ll_w1"], p["ll_w2"])
    up = _in_lrelu_ref(_tconv_ref(child, p["up_w"]))
    return _conv_block_ref(jnp.concatenate([left, up], axis=1),
                           p["tr_w1"], p["tr_w2"])


# ---------------------------------------------------------------------------
# Demo / self-check
# ---------------------------------------------------------------------------

if __name__ == "__main__":
    N, C_IN, C_OUT, C_CHILD, H, W = 2, 4, 8, 16, 16, 16

    key = jax.random.PRNGKey(0)
    ks = jax.random.split(key, 8)

    def conv_w(k, co, ci):
        scale = 1.0 / ((ci * 9) ** 0.5)
        return scale * jax.random.normal(k, (co, ci, 3, 3), dtype=jnp.float32)

    def tconv_w(k, ci, co):
        scale = 1.0 / ((ci * 4) ** 0.5)
        return scale * jax.random.normal(k, (ci, co, 2, 2), dtype=jnp.float32)

    x = jax.random.normal(ks[0], (N, C_IN, H, W), dtype=jnp.float32)
    params = {
        "tl_w1": conv_w(ks[1], C_OUT, C_IN),           # left_block conv1
        "tl_w2": conv_w(ks[2], C_OUT, C_OUT),          # left_block conv2
        "ll_w1": conv_w(ks[3], C_CHILD, C_OUT),        # child (leaf) conv1
        "ll_w2": conv_w(ks[4], C_CHILD, C_CHILD),      # child (leaf) conv2
        "up_w": tconv_w(ks[5], C_CHILD, C_OUT),        # TransposeConvBlock weight
        "tr_w1": conv_w(ks[6], C_OUT, 2 * C_OUT),      # right_block conv1 (cat input)
        "tr_w2": conv_w(ks[7], C_OUT, C_OUT),          # right_block conv2
    }

    fwd = jax.jit(unet_level_forward)
    out = jax.block_until_ready(fwd(x, params))
    assert out.shape == (N, C_OUT, H, W), out.shape

    ref = _unet_ref(x, params)
    max_err = float(jnp.max(jnp.abs(out - ref)))
    assert jnp.allclose(out, ref, atol=2e-3, rtol=2e-3), max_err

    print("KERNEL_OK")
</pallas_src>

<mosaic_0001>
module attributes {stable_mosaic.version = 11 : i64} {
  func.func @_matmul_in_lrelu_kernel(%arg0: i32, %arg1: memref<1x36x256xf32, #tpu.memory_space<vmem>>, %arg2: memref<8x36xf32, #tpu.memory_space<vmem>>, %arg3: memref<1x8x256xf32, #tpu.memory_space<vmem>>) attributes {dimension_semantics = [#tpu.dimension_semantics<parallel>], iteration_bounds = array<i64: 2>, scalar_prefetch = 0 : i64, scratch_operands = 0 : i64, tpu.core_type = #tpu.core_type<tc>, window_params = [{transform_indices = @transform_0, window_bounds = array<i64: 1, 36, 256>}, {pipeline_mode = #tpu.pipeline_mode<synchronous>, transform_indices = @transform_1, window_bounds = array<i64: 8, 36>}, {transform_indices = @transform_2, window_bounds = array<i64: 1, 8, 256>}]} {
    %c0 = arith.constant 0 : index
    %c0_0 = arith.constant 0 : index
    %c0_1 = arith.constant 0 : index
    %0 = vector.load %arg1[%c0, %c0_0, %c0_1] : memref<1x36x256xf32, #tpu.memory_space<vmem>>, vector<1x36x256xf32>
    %1 = vector.shape_cast %0 : vector<1x36x256xf32> to vector<36x256xf32>
    %c0_2 = arith.constant 0 : index
    %c0_3 = arith.constant 0 : index
    %2 = vector.load %arg2[%c0_2, %c0_3] : memref<8x36xf32, #tpu.memory_space<vmem>>, vector<8x36xf32>
    %cst = arith.constant dense<0.000000e+00> : vector<8x256xf32>
    %3 = tpu.matmul %2, %1, %cst {dimension_numbers = #tpu.dot_dimension_numbers<[1], [0], [0], [1], [0, 0, 1, 1], [], []>} : vector<8x36xf32>, vector<36x256xf32>, vector<8x256xf32> -> vector<8x256xf32>
    %cst_4 = arith.constant dense<0.000000e+00> : vector<8xf32>
    %4 = vector.multi_reduction <add>, %3, %cst_4 [1] : vector<8x256xf32> to vector<8xf32>
    %5 = vector.shape_cast %4 : vector<8xf32> to vector<8x1xf32>
    %cst_5 = arith.constant 2.560000e+02 : f32
    %6 = vector.broadcast %cst_5 : f32 to vector<8x1xf32>
    %7 = arith.divf %5, %6 : vector<8x1xf32>
    %8 = vector.broadcast %7 : vector<8x1xf32> to vector<8x256xf32>
    %9 = arith.subf %3, %8 : vector<8x256xf32>
    %10 = arith.mulf %9, %9 : vector<8x256xf32>
    %cst_6 = arith.constant dense<0.000000e+00> : vector<8xf32>
    %11 = vector.multi_reduction <add>, %10, %cst_6 [1] : vector<8x256xf32> to vector<8xf32>
    %12 = vector.shape_cast %11 : vector<8xf32> to vector<8x1xf32>
    %cst_7 = arith.constant 2.560000e+02 : f32
    %13 = vector.broadcast %cst_7 : f32 to vector<8x1xf32>
    %14 = arith.divf %12, %13 : vector<8x1xf32>
    %cst_8 = arith.constant 9.99999974E-6 : f32
    %15 = vector.broadcast %cst_8 : f32 to vector<8x1xf32>
    %16 = arith.addf %14, %15 : vector<8x1xf32>
    %17 = math.sqrt %16 : vector<8x1xf32>
    %18 = vector.broadcast %17 : vector<8x1xf32> to vector<8x256xf32>
    %19 = arith.divf %9, %18 : vector<8x256xf32>
    %cst_9 = arith.constant 0.000000e+00 : f32
    %20 = vector.broadcast %cst_9 : f32 to vector<8x256xf32>
    %21 = arith.cmpf oge, %19, %20 : vector<8x256xf32>
    %cst_10 = arith.constant 2.000000e-01 : f32
    %22 = vector.broadcast %cst_10 : f32 to vector<8x256xf32>
    %23 = arith.mulf %22, %19 : vector<8x256xf32>
    %24 = arith.select %21, %19, %23 : vector<8x256xi1>, vector<8x256xf32>
    %c0_11 = arith.constant 0 : index
    %c0_12 = arith.constant 0 : index
    %c0_13 = arith.constant 0 : index
    %25 = vector.load %arg3[%c0_11, %c0_12, %c0_13] : memref<1x8x256xf32, #tpu.memory_space<vmem>>, vector<1x8x256xf32>
    %26 = vector.shape_cast %25 : vector<1x8x256xf32> to vector<8x256xf32>
    %27 = vector.shape_cast %24 : vector<8x256xf32> to vector<1x8x256xf32>
    tpu.vector_store %arg3[%c0_11, %c0_12, %c0_13], %27 {strides = array<i32>} : memref<1x8x256xf32, #tpu.memory_space<vmem>>, vector<1x8x256xf32>,
    return
  }
  func.func @transform_0(%arg0: i32) -> (i32, i32, i32) {
    %c0_i32 = arith.constant 0 : i32
    %c0_i32_0 = arith.constant 0 : i32
    %c0_i32_1 = arith.constant 0 : i32
    return %arg0, %c0_i32, %c0_i32_0 : i32, i32, i32
  }
  func.func @transform_1(%arg0: i32) -> (i32, i32) {
    %c0_i32 = arith.constant 0 : i32
    %c0_i32_0 = arith.constant 0 : i32
    %c0_i32_1 = arith.constant 0 : i32
    return %c0_i32, %c0_i32_0 : i32, i32
  }
  func.func @transform_2(%arg0: i32) -> (i32, i32, i32) {
    %c0_i32 = arith.constant 0 : i32
    %c0_i32_0 = arith.constant 0 : i32
    %c0_i32_1 = arith.constant 0 : i32
    return %arg0, %c0_i32, %c0_i32_0 : i32, i32, i32
  }
}

module attributes {stable_mosaic.version = 11 : i64} {
  func.func @_matmul_in_lrelu_kernel(%arg0: i32, %arg1: memref<1x72x256xf32, #tpu.memory_space<vmem>>, %arg2: memref<8x72xf32, #tpu.memory_space<vmem>>, %arg3: memref<1x8x256xf32, #tpu.memory_space<vmem>>) attributes {dimension_semantics = [#tpu.dimension_semantics<parallel>], iteration_bounds = array<i64: 2>, scalar_prefetch = 0 : i64, scratch_operands = 0 : i64, tpu.core_type = #tpu.core_type<tc>, window_params = [{transform_indices = @transform_0, window_bounds = array<i64: 1, 72, 256>}, {pipeline_mode = #tpu.pipeline_mode<synchronous>, transform_indices = @transform_1, window_bounds = array<i64: 8, 72>}, {transform_indices = @transform_2, window_bounds = array<i64: 1, 8, 256>}]} {
    %c0 = arith.constant 0 : index
    %c0_0 = arith.constant 0 : index
    %c0_1 = arith.constant 0 : index
    %0 = vector.load %arg1[%c0, %c0_0, %c0_1] : memref<1x72x256xf32, #tpu.memory_space<vmem>>, vector<1x72x256xf32>
    %1 = vector.shape_cast %0 : vector<1x72x256xf32> to vector<72x256xf32>
    %c0_2 = arith.constant 0 : index
    %c0_3 = arith.constant 0 : index
    %2 = vector.load %arg2[%c0_2, %c0_3] : memref<8x72xf32, #tpu.memory_space<vmem>>, vector<8x72xf32>
    %cst = arith.constant dense<0.000000e+00> : vector<8x256xf32>
    %3 = tpu.matmul %2, %1, %cst {dimension_numbers = #tpu.dot_dimension_numbers<[1], [0], [0], [1], [0, 0, 1, 1], [], []>} : vector<8x72xf32>, vector<72x256xf32>, vector<8x256xf32> -> vector<8x256xf32>
    %cst_4 = arith.constant dense<0.000000e+00> : vector<8xf32>
    %4 = vector.multi_reduction <add>, %3, %cst_4 [1] : vector<8x256xf32> to vector<8xf32>
    %5 = vector.shape_cast %4 : vector<8xf32> to vector<8x1xf32>
    %cst_5 = arith.constant 2.560000e+02 : f32
    %6 = vector.broadcast %cst_5 : f32 to vector<8x1xf32>
    %7 = arith.divf %5, %6 : vector<8x1xf32>
    %8 = vector.broadcast %7 : vector<8x1xf32> to vector<8x256xf32>
    %9 = arith.subf %3, %8 : vector<8x256xf32>
    %10 = arith.mulf %9, %9 : vector<8x256xf32>
    %cst_6 = arith.constant dense<0.000000e+00> : vector<8xf32>
    %11 = vector.multi_reduction <add>, %10, %cst_6 [1] : vector<8x256xf32> to vector<8xf32>
    %12 = vector.shape_cast %11 : vector<8xf32> to vector<8x1xf32>
    %cst_7 = arith.constant 2.560000e+02 : f32
    %13 = vector.broadcast %cst_7 : f32 to vector<8x1xf32>
    %14 = arith.divf %12, %13 : vector<8x1xf32>
    %cst_8 = arith.constant 9.99999974E-6 : f32
    %15 = vector.broadcast %cst_8 : f32 to vector<8x1xf32>
    %16 = arith.addf %14, %15 : vector<8x1xf32>
    %17 = math.sqrt %16 : vector<8x1xf32>
    %18 = vector.broadcast %17 : vector<8x1xf32> to vector<8x256xf32>
    %19 = arith.divf %9, %18 : vector<8x256xf32>
    %cst_9 = arith.constant 0.000000e+00 : f32
    %20 = vector.broadcast %cst_9 : f32 to vector<8x256xf32>
    %21 = arith.cmpf oge, %19, %20 : vector<8x256xf32>
    %cst_10 = arith.constant 2.000000e-01 : f32
    %22 = vector.broadcast %cst_10 : f32 to vector<8x256xf32>
    %23 = arith.mulf %22, %19 : vector<8x256xf32>
    %24 = arith.select %21, %19, %23 : vector<8x256xi1>, vector<8x256xf32>
    %c0_11 = arith.constant 0 : index
    %c0_12 = arith.constant 0 : index
    %c0_13 = arith.constant 0 : index
    %25 = vector.load %arg3[%c0_11, %c0_12, %c0_13] : memref<1x8x256xf32, #tpu.memory_space<vmem>>, vector<1x8x256xf32>
    %26 = vector.shape_cast %25 : vector<1x8x256xf32> to vector<8x256xf32>
    %27 = vector.shape_cast %24 : vector<8x256xf32> to vector<1x8x256xf32>
    tpu.vector_store %arg3[%c0_11, %c0_12, %c0_13], %27 {strides = array<i32>} : memref<1x8x256xf32, #tpu.memory_space<vmem>>, vector<1x8x256xf32>,
    return
  }
  func.func @transform_0(%arg0: i32) -> (i32, i32, i32) {
    %c0_i32 = arith.constant 0 : i32
    %c0_i32_0 = arith.constant 0 : i32
    %c0_i32_1 = arith.constant 0 : i32
    return %arg0, %c0_i32, %c0_i32_0 : i32, i32, i32
  }
  func.func @transform_1(%arg0: i32) -> (i32, i32) {
    %c0_i32 = arith.constant 0 : i32
    %c0_i32_0 = arith.constant 0 : i32
    %c0_i32_1 = arith.constant 0 : i32
    return %c0_i32, %c0_i32_0 : i32, i32
  }
  func.func @transform_2(%arg0: i32) -> (i32, i32, i32) {
    %c0_i32 = arith.constant 0 : i32
    %c0_i32_0 = arith.constant 0 : i32
    %c0_i32_1 = arith.constant 0 : i32
    return %arg0, %c0_i32, %c0_i32_0 : i32, i32, i32
  }
}

module attributes {stable_mosaic.version = 11 : i64} {
  func.func @_pool_matmul_kernel(%arg0: i32, %arg1: memref<1x8x256xf32, #tpu.memory_space<vmem>>, %arg2: memref<256x64xf32, #tpu.memory_space<vmem>>, %arg3: memref<1x8x64xf32, #tpu.memory_space<vmem>>) attributes {dimension_semantics = [#tpu.dimension_semantics<parallel>], iteration_bounds = array<i64: 2>, scalar_prefetch = 0 : i64, scratch_operands = 0 : i64, tpu.core_type = #tpu.core_type<tc>, window_params = [{transform_indices = @transform_0, window_bounds = array<i64: 1, 8, 256>}, {pipeline_mode = #tpu.pipeline_mode<synchronous>, transform_indices = @transform_1, window_bounds = array<i64: 256, 64>}, {transform_indices = @transform_2, window_bounds = array<i64: 1, 8, 64>}]} {
    %c0 = arith.constant 0 : index
    %c0_0 = arith.constant 0 : index
    %c0_1 = arith.constant 0 : index
    %0 = vector.load %arg1[%c0, %c0_0, %c0_1] : memref<1x8x256xf32, #tpu.memory_space<vmem>>, vector<1x8x256xf32>
    %1 = vector.shape_cast %0 : vector<1x8x256xf32> to vector<8x256xf32>
    %c0_2 = arith.constant 0 : index
    %c0_3 = arith.constant 0 : index
    %2 = vector.load %arg2[%c0_2, %c0_3] : memref<256x64xf32, #tpu.memory_space<vmem>>, vector<256x64xf32>
    %cst = arith.constant dense<0.000000e+00> : vector<8x64xf32>
    %3 = tpu.matmul %1, %2, %cst {dimension_numbers = #tpu.dot_dimension_numbers<[1], [0], [0], [1], [0, 0, 1, 1], [], []>} : vector<8x256xf32>, vector<256x64xf32>, vector<8x64xf32> -> vector<8x64xf32>
    %c0_4 = arith.constant 0 : index
    %c0_5 = arith.constant 0 : index
    %c0_6 = arith.constant 0 : index
    %4 = vector.load %arg3[%c0_4, %c0_5, %c0_6] : memref<1x8x64xf32, #tpu.memory_space<vmem>>, vector<1x8x64xf32>
    %5 = vector.shape_cast %4 : vector<1x8x64xf32> to vector<8x64xf32>
    %6 = vector.shape_cast %3 : vector<8x64xf32> to vector<1x8x64xf32>
    tpu.vector_store %arg3[%c0_4, %c0_5, %c0_6], %6 {strides = array<i32>} : memref<1x8x64xf32, #tpu.memory_space<vmem>>, vector<1x8x64xf32>,
    return
  }
  func.func @transform_0(%arg0: i32) -> (i32, i32, i32) {
    %c0_i32 = arith.constant 0 : i32
    %c0_i32_0 = arith.constant 0 : i32
    %c0_i32_1 = arith.constant 0 : i32
    return %arg0, %c0_i32, %c0_i32_0 : i32, i32, i32
  }
  func.func @transform_1(%arg0: i32) -> (i32, i32) {
    %c0_i32 = arith.constant 0 : i32
    %c0_i32_0 = arith.constant 0 : i32
    %c0_i32_1 = arith.constant 0 : i32
    return %c0_i32, %c0_i32_0 : i32, i32
  }
  func.func @transform_2(%arg0: i32) -> (i32, i32, i32) {
    %c0_i32 = arith.constant 0 : i32
    %c0_i32_0 = arith.constant 0 : i32
    %c0_i32_1 = arith.constant 0 : i32
    return %arg0, %c0_i32, %c0_i32_0 : i32, i32, i32
  }
}

module attributes {stable_mosaic.version = 11 : i64} {
  func.func @_matmul_in_lrelu_kernel(%arg0: i32, %arg1: memref<1x72x64xf32, #tpu.memory_space<vmem>>, %arg2: memref<16x72xf32, #tpu.memory_space<vmem>>, %arg3: memref<1x16x64xf32, #tpu.memory_space<vmem>>) attributes {dimension_semantics = [#tpu.dimension_semantics<parallel>], iteration_bounds = array<i64: 2>, scalar_prefetch = 0 : i64, scratch_operands = 0 : i64, tpu.core_type = #tpu.core_type<tc>, window_params = [{transform_indices = @transform_0, window_bounds = array<i64: 1, 72, 64>}, {pipeline_mode = #tpu.pipeline_mode<synchronous>, transform_indices = @transform_1, window_bounds = array<i64: 16, 72>}, {transform_indices = @transform_2, window_bounds = array<i64: 1, 16, 64>}]} {
    %c0 = arith.constant 0 : index
    %c0_0 = arith.constant 0 : index
    %c0_1 = arith.constant 0 : index
    %0 = vector.load %arg1[%c0, %c0_0, %c0_1] : memref<1x72x64xf32, #tpu.memory_space<vmem>>, vector<1x72x64xf32>
    %1 = vector.shape_cast %0 : vector<1x72x64xf32> to vector<72x64xf32>
    %c0_2 = arith.constant 0 : index
    %c0_3 = arith.constant 0 : index
    %2 = vector.load %arg2[%c0_2, %c0_3] : memref<16x72xf32, #tpu.memory_space<vmem>>, vector<16x72xf32>
    %cst = arith.constant dense<0.000000e+00> : vector<16x64xf32>
    %3 = tpu.matmul %2, %1, %cst {dimension_numbers = #tpu.dot_dimension_numbers<[1], [0], [0], [1], [0, 0, 1, 1], [], []>} : vector<16x72xf32>, vector<72x64xf32>, vector<16x64xf32> -> vector<16x64xf32>
    %cst_4 = arith.constant dense<0.000000e+00> : vector<16xf32>
    %4 = vector.multi_reduction <add>, %3, %cst_4 [1] : vector<16x64xf32> to vector<16xf32>
    %5 = vector.shape_cast %4 : vector<16xf32> to vector<16x1xf32>
    %cst_5 = arith.constant 6.400000e+01 : f32
    %6 = vector.broadcast %cst_5 : f32 to vector<16x1xf32>
    %7 = arith.divf %5, %6 : vector<16x1xf32>
    %8 = vector.broadcast %7 : vector<16x1xf32> to vector<16x64xf32>
    %9 = arith.subf %3, %8 : vector<16x64xf32>
    %10 = arith.mulf %9, %9 : vector<16x64xf32>
    %cst_6 = arith.constant dense<0.000000e+00> : vector<16xf32>
    %11 = vector.multi_reduction <add>, %10, %cst_6 [1] : vector<16x64xf32> to vector<16xf32>
    %12 = vector.shape_cast %11 : vector<16xf32> to vector<16x1xf32>
    %cst_7 = arith.constant 6.400000e+01 : f32
    %13 = vector.broadcast %cst_7 : f32 to vector<16x1xf32>
    %14 = arith.divf %12, %13 : vector<16x1xf32>
    %cst_8 = arith.constant 9.99999974E-6 : f32
    %15 = vector.broadcast %cst_8 : f32 to vector<16x1xf32>
    %16 = arith.addf %14, %15 : vector<16x1xf32>
    %17 = math.sqrt %16 : vector<16x1xf32>
    %18 = vector.broadcast %17 : vector<16x1xf32> to vector<16x64xf32>
    %19 = arith.divf %9, %18 : vector<16x64xf32>
    %cst_9 = arith.constant 0.000000e+00 : f32
    %20 = vector.broadcast %cst_9 : f32 to vector<16x64xf32>
    %21 = arith.cmpf oge, %19, %20 : vector<16x64xf32>
    %cst_10 = arith.constant 2.000000e-01 : f32
    %22 = vector.broadcast %cst_10 : f32 to vector<16x64xf32>
    %23 = arith.mulf %22, %19 : vector<16x64xf32>
    %24 = arith.select %21, %19, %23 : vector<16x64xi1>, vector<16x64xf32>
    %c0_11 = arith.constant 0 : index
    %c0_12 = arith.constant 0 : index
    %c0_13 = arith.constant 0 : index
    %25 = vector.load %arg3[%c0_11, %c0_12, %c0_13] : memref<1x16x64xf32, #tpu.memory_space<vmem>>, vector<1x16x64xf32>
    %26 = vector.shape_cast %25 : vector<1x16x64xf32> to vector<16x64xf32>
    %27 = vector.shape_cast %24 : vector<16x64xf32> to vector<1x16x64xf32>
    tpu.vector_store %arg3[%c0_11, %c0_12, %c0_13], %27 {strides = array<i32>} : memref<1x16x64xf32, #tpu.memory_space<vmem>>, vector<1x16x64xf32>,
    return
  }
  func.func @transform_0(%arg0: i32) -> (i32, i32, i32) {
    %c0_i32 = arith.constant 0 : i32
    %c0_i32_0 = arith.constant 0 : i32
    %c0_i32_1 = arith.constant 0 : i32
    return %arg0, %c0_i32, %c0_i32_0 : i32, i32, i32
  }
  func.func @transform_1(%arg0: i32) -> (i32, i32) {
    %c0_i32 = arith.constant 0 : i32
    %c0_i32_0 = arith.constant 0 : i32
    %c0_i32_1 = arith.constant 0 : i32
    return %c0_i32, %c0_i32_0 : i32, i32
  }
  func.func @transform_2(%arg0: i32) -> (i32, i32, i32) {
    %c0_i32 = arith.constant 0 : i32
    %c0_i32_0 = arith.constant 0 : i32
    %c0_i32_1 = arith.constant 0 : i32
    return %arg0, %c0_i32, %c0_i32_0 : i32, i32, i32
  }
}

module attributes {stable_mosaic.version = 11 : i64} {
  func.func @_matmul_in_lrelu_kernel(%arg0: i32, %arg1: memref<1x144x64xf32, #tpu.memory_space<vmem>>, %arg2: memref<16x144xf32, #tpu.memory_space<vmem>>, %arg3: memref<1x16x64xf32, #tpu.memory_space<vmem>>) attributes {dimension_semantics = [#tpu.dimension_semantics<parallel>], iteration_bounds = array<i64: 2>, scalar_prefetch = 0 : i64, scratch_operands = 0 : i64, tpu.core_type = #tpu.core_type<tc>, window_params = [{transform_indices = @transform_0, window_bounds = array<i64: 1, 144, 64>}, {pipeline_mode = #tpu.pipeline_mode<synchronous>, transform_indices = @transform_1, window_bounds = array<i64: 16, 144>}, {transform_indices = @transform_2, window_bounds = array<i64: 1, 16, 64>}]} {
    %c0 = arith.constant 0 : index
    %c0_0 = arith.constant 0 : index
    %c0_1 = arith.constant 0 : index
    %0 = vector.load %arg1[%c0, %c0_0, %c0_1] : memref<1x144x64xf32, #tpu.memory_space<vmem>>, vector<1x144x64xf32>
    %1 = vector.shape_cast %0 : vector<1x144x64xf32> to vector<144x64xf32>
    %c0_2 = arith.constant 0 : index
    %c0_3 = arith.constant 0 : index
    %2 = vector.load %arg2[%c0_2, %c0_3] : memref<16x144xf32, #tpu.memory_space<vmem>>, vector<16x144xf32>
    %cst = arith.constant dense<0.000000e+00> : vector<16x64xf32>
    %3 = tpu.matmul %2, %1, %cst {dimension_numbers = #tpu.dot_dimension_numbers<[1], [0], [0], [1], [0, 0, 1, 1], [], []>} : vector<16x144xf32>, vector<144x64xf32>, vector<16x64xf32> -> vector<16x64xf32>
    %cst_4 = arith.constant dense<0.000000e+00> : vector<16xf32>
    %4 = vector.multi_reduction <add>, %3, %cst_4 [1] : vector<16x64xf32> to vector<16xf32>
    %5 = vector.shape_cast %4 : vector<16xf32> to vector<16x1xf32>
    %cst_5 = arith.constant 6.400000e+01 : f32
    %6 = vector.broadcast %cst_5 : f32 to vector<16x1xf32>
    %7 = arith.divf %5, %6 : vector<16x1xf32>
    %8 = vector.broadcast %7 : vector<16x1xf32> to vector<16x64xf32>
    %9 = arith.subf %3, %8 : vector<16x64xf32>
    %10 = arith.mulf %9, %9 : vector<16x64xf32>
    %cst_6 = arith.constant dense<0.000000e+00> : vector<16xf32>
    %11 = vector.multi_reduction <add>, %10, %cst_6 [1] : vector<16x64xf32> to vector<16xf32>
    %12 = vector.shape_cast %11 : vector<16xf32> to vector<16x1xf32>
    %cst_7 = arith.constant 6.400000e+01 : f32
    %13 = vector.broadcast %cst_7 : f32 to vector<16x1xf32>
    %14 = arith.divf %12, %13 : vector<16x1xf32>
    %cst_8 = arith.constant 9.99999974E-6 : f32
    %15 = vector.broadcast %cst_8 : f32 to vector<16x1xf32>
    %16 = arith.addf %14, %15 : vector<16x1xf32>
    %17 = math.sqrt %16 : vector<16x1xf32>
    %18 = vector.broadcast %17 : vector<16x1xf32> to vector<16x64xf32>
    %19 = arith.divf %9, %18 : vector<16x64xf32>
    %cst_9 = arith.constant 0.000000e+00 : f32
    %20 = vector.broadcast %cst_9 : f32 to vector<16x64xf32>
    %21 = arith.cmpf oge, %19, %20 : vector<16x64xf32>
    %cst_10 = arith.constant 2.000000e-01 : f32
    %22 = vector.broadcast %cst_10 : f32 to vector<16x64xf32>
    %23 = arith.mulf %22, %19 : vector<16x64xf32>
    %24 = arith.select %21, %19, %23 : vector<16x64xi1>, vector<16x64xf32>
    %c0_11 = arith.constant 0 : index
    %c0_12 = arith.constant 0 : index
    %c0_13 = arith.constant 0 : index
    %25 = vector.load %arg3[%c0_11, %c0_12, %c0_13] : memref<1x16x64xf32, #tpu.memory_space<vmem>>, vector<1x16x64xf32>
    %26 = vector.shape_cast %25 : vector<1x16x64xf32> to vector<16x64xf32>
    %27 = vector.shape_cast %24 : vector<16x64xf32> to vector<1x16x64xf32>
    tpu.vector_store %arg3[%c0_11, %c0_12, %c0_13], %27 {strides = array<i32>} : memref<1x16x64xf32, #tpu.memory_space<vmem>>, vector<1x16x64xf32>,
    return
  }
  func.func @transform_0(%arg0: i32) -> (i32, i32, i32) {
    %c0_i32 = arith.constant 0 : i32
    %c0_i32_0 = arith.constant 0 : i32
    %c0_i32_1 = arith.constant 0 : i32
    return %arg0, %c0_i32, %c0_i32_0 : i32, i32, i32
  }
  func.func @transform_1(%arg0: i32) -> (i32, i32) {
    %c0_i32 = arith.constant 0 : i32
    %c0_i32_0 = arith.constant 0 : i32
    %c0_i32_1 = arith.constant 0 : i32
    return %c0_i32, %c0_i32_0 : i32, i32
  }
  func.func @transform_2(%arg0: i32) -> (i32, i32, i32) {
    %c0_i32 = arith.constant 0 : i32
    %c0_i32_0 = arith.constant 0 : i32
    %c0_i32_1 = arith.constant 0 : i32
    return %arg0, %c0_i32, %c0_i32_0 : i32, i32, i32
  }
}

module attributes {stable_mosaic.version = 11 : i64} {
  func.func @_matmul_in_lrelu_kernel(%arg0: i32, %arg1: memref<1x64x256xf32, #tpu.memory_space<vmem>>, %arg2: memref<8x64xf32, #tpu.memory_space<vmem>>, %arg3: memref<1x8x256xf32, #tpu.memory_space<vmem>>) attributes {dimension_semantics = [#tpu.dimension_semantics<parallel>], iteration_bounds = array<i64: 2>, scalar_prefetch = 0 : i64, scratch_operands = 0 : i64, tpu.core_type = #tpu.core_type<tc>, window_params = [{transform_indices = @transform_0, window_bounds = array<i64: 1, 64, 256>}, {pipeline_mode = #tpu.pipeline_mode<synchronous>, transform_indices = @transform_1, window_bounds = array<i64: 8, 64>}, {transform_indices = @transform_2, window_bounds = array<i64: 1, 8, 256>}]} {
    %c0 = arith.constant 0 : index
    %c0_0 = arith.constant 0 : index
    %c0_1 = arith.constant 0 : index
    %0 = vector.load %arg1[%c0, %c0_0, %c0_1] : memref<1x64x256xf32, #tpu.memory_space<vmem>>, vector<1x64x256xf32>
    %1 = vector.shape_cast %0 : vector<1x64x256xf32> to vector<64x256xf32>
    %c0_2 = arith.constant 0 : index
    %c0_3 = arith.constant 0 : index
    %2 = vector.load %arg2[%c0_2, %c0_3] : memref<8x64xf32, #tpu.memory_space<vmem>>, vector<8x64xf32>
    %cst = arith.constant dense<0.000000e+00> : vector<8x256xf32>
    %3 = tpu.matmul %2, %1, %cst {dimension_numbers = #tpu.dot_dimension_numbers<[1], [0], [0], [1], [0, 0, 1, 1], [], []>} : vector<8x64xf32>, vector<64x256xf32>, vector<8x256xf32> -> vector<8x256xf32>
    %cst_4 = arith.constant dense<0.000000e+00> : vector<8xf32>
    %4 = vector.multi_reduction <add>, %3, %cst_4 [1] : vector<8x256xf32> to vector<8xf32>
    %5 = vector.shape_cast %4 : vector<8xf32> to vector<8x1xf32>
    %cst_5 = arith.constant 2.560000e+02 : f32
    %6 = vector.broadcast %cst_5 : f32 to vector<8x1xf32>
    %7 = arith.divf %5, %6 : vector<8x1xf32>
    %8 = vector.broadcast %7 : vector<8x1xf32> to vector<8x256xf32>
    %9 = arith.subf %3, %8 : vector<8x256xf32>
    %10 = arith.mulf %9, %9 : vector<8x256xf32>
    %cst_6 = arith.constant dense<0.000000e+00> : vector<8xf32>
    %11 = vector.multi_reduction <add>, %10, %cst_6 [1] : vector<8x256xf32> to vector<8xf32>
    %12 = vector.shape_cast %11 : vector<8xf32> to vector<8x1xf32>
    %cst_7 = arith.constant 2.560000e+02 : f32
    %13 = vector.broadcast %cst_7 : f32 to vector<8x1xf32>
    %14 = arith.divf %12, %13 : vector<8x1xf32>
    %cst_8 = arith.constant 9.99999974E-6 : f32
    %15 = vector.broadcast %cst_8 : f32 to vector<8x1xf32>
    %16 = arith.addf %14, %15 : vector<8x1xf32>
    %17 = math.sqrt %16 : vector<8x1xf32>
    %18 = vector.broadcast %17 : vector<8x1xf32> to vector<8x256xf32>
    %19 = arith.divf %9, %18 : vector<8x256xf32>
    %cst_9 = arith.constant 0.000000e+00 : f32
    %20 = vector.broadcast %cst_9 : f32 to vector<8x256xf32>
    %21 = arith.cmpf oge, %19, %20 : vector<8x256xf32>
    %cst_10 = arith.constant 2.000000e-01 : f32
    %22 = vector.broadcast %cst_10 : f32 to vector<8x256xf32>
    %23 = arith.mulf %22, %19 : vector<8x256xf32>
    %24 = arith.select %21, %19, %23 : vector<8x256xi1>, vector<8x256xf32>
    %c0_11 = arith.constant 0 : index
    %c0_12 = arith.constant 0 : index
    %c0_13 = arith.constant 0 : index
    %25 = vector.load %arg3[%c0_11, %c0_12, %c0_13] : memref<1x8x256xf32, #tpu.memory_space<vmem>>, vector<1x8x256xf32>
    %26 = vector.shape_cast %25 : vector<1x8x256xf32> to vector<8x256xf32>
    %27 = vector.shape_cast %24 : vector<8x256xf32> to vector<1x8x256xf32>
    tpu.vector_store %arg3[%c0_11, %c0_12, %c0_13], %27 {strides = array<i32>} : memref<1x8x256xf32, #tpu.memory_space<vmem>>, vector<1x8x256xf32>,
    return
  }
  func.func @transform_0(%arg0: i32) -> (i32, i32, i32) {
    %c0_i32 = arith.constant 0 : i32
    %c0_i32_0 = arith.constant 0 : i32
    %c0_i32_1 = arith.constant 0 : i32
    return %arg0, %c0_i32, %c0_i32_0 : i32, i32, i32
  }
  func.func @transform_1(%arg0: i32) -> (i32, i32) {
    %c0_i32 = arith.constant 0 : i32
    %c0_i32_0 = arith.constant 0 : i32
    %c0_i32_1 = arith.constant 0 : i32
    return %c0_i32, %c0_i32_0 : i32, i32
  }
  func.func @transform_2(%arg0: i32) -> (i32, i32, i32) {
    %c0_i32 = arith.constant 0 : i32
    %c0_i32_0 = arith.constant 0 : i32
    %c0_i32_1 = arith.constant 0 : i32
    return %arg0, %c0_i32, %c0_i32_0 : i32, i32, i32
  }
}

module attributes {stable_mosaic.version = 11 : i64} {
  func.func @_matmul_in_lrelu_kernel(%arg0: i32, %arg1: memref<1x144x256xf32, #tpu.memory_space<vmem>>, %arg2: memref<8x144xf32, #tpu.memory_space<vmem>>, %arg3: memref<1x8x256xf32, #tpu.memory_space<vmem>>) attributes {dimension_semantics = [#tpu.dimension_semantics<parallel>], iteration_bounds = array<i64: 2>, scalar_prefetch = 0 : i64, scratch_operands = 0 : i64, tpu.core_type = #tpu.core_type<tc>, window_params = [{transform_indices = @transform_0, window_bounds = array<i64: 1, 144, 256>}, {pipeline_mode = #tpu.pipeline_mode<synchronous>, transform_indices = @transform_1, window_bounds = array<i64: 8, 144>}, {transform_indices = @transform_2, window_bounds = array<i64: 1, 8, 256>}]} {
    %c0 = arith.constant 0 : index
    %c0_0 = arith.constant 0 : index
    %c0_1 = arith.constant 0 : index
    %0 = vector.load %arg1[%c0, %c0_0, %c0_1] : memref<1x144x256xf32, #tpu.memory_space<vmem>>, vector<1x144x256xf32>
    %1 = vector.shape_cast %0 : vector<1x144x256xf32> to vector<144x256xf32>
    %c0_2 = arith.constant 0 : index
    %c0_3 = arith.constant 0 : index
    %2 = vector.load %arg2[%c0_2, %c0_3] : memref<8x144xf32, #tpu.memory_space<vmem>>, vector<8x144xf32>
    %cst = arith.constant dense<0.000000e+00> : vector<8x256xf32>
    %3 = tpu.matmul %2, %1, %cst {dimension_numbers = #tpu.dot_dimension_numbers<[1], [0], [0], [1], [0, 0, 1, 1], [], []>} : vector<8x144xf32>, vector<144x256xf32>, vector<8x256xf32> -> vector<8x256xf32>
    %cst_4 = arith.constant dense<0.000000e+00> : vector<8xf32>
    %4 = vector.multi_reduction <add>, %3, %cst_4 [1] : vector<8x256xf32> to vector<8xf32>
    %5 = vector.shape_cast %4 : vector<8xf32> to vector<8x1xf32>
    %cst_5 = arith.constant 2.560000e+02 : f32
    %6 = vector.broadcast %cst_5 : f32 to vector<8x1xf32>
    %7 = arith.divf %5, %6 : vector<8x1xf32>
    %8 = vector.broadcast %7 : vector<8x1xf32> to vector<8x256xf32>
    %9 = arith.subf %3, %8 : vector<8x256xf32>
    %10 = arith.mulf %9, %9 : vector<8x256xf32>
    %cst_6 = arith.constant dense<0.000000e+00> : vector<8xf32>
    %11 = vector.multi_reduction <add>, %10, %cst_6 [1] : vector<8x256xf32> to vector<8xf32>
    %12 = vector.shape_cast %11 : vector<8xf32> to vector<8x1xf32>
    %cst_7 = arith.constant 2.560000e+02 : f32
    %13 = vector.broadcast %cst_7 : f32 to vector<8x1xf32>
    %14 = arith.divf %12, %13 : vector<8x1xf32>
    %cst_8 = arith.constant 9.99999974E-6 : f32
    %15 = vector.broadcast %cst_8 : f32 to vector<8x1xf32>
    %16 = arith.addf %14, %15 : vector<8x1xf32>
    %17 = math.sqrt %16 : vector<8x1xf32>
    %18 = vector.broadcast %17 : vector<8x1xf32> to vector<8x256xf32>
    %19 = arith.divf %9, %18 : vector<8x256xf32>
    %cst_9 = arith.constant 0.000000e+00 : f32
    %20 = vector.broadcast %cst_9 : f32 to vector<8x256xf32>
    %21 = arith.cmpf oge, %19, %20 : vector<8x256xf32>
    %cst_10 = arith.constant 2.000000e-01 : f32
    %22 = vector.broadcast %cst_10 : f32 to vector<8x256xf32>
    %23 = arith.mulf %22, %19 : vector<8x256xf32>
    %24 = arith.select %21, %19, %23 : vector<8x256xi1>, vector<8x256xf32>
    %c0_11 = arith.constant 0 : index
    %c0_12 = arith.constant 0 : index
    %c0_13 = arith.constant 0 : index
    %25 = vector.load %arg3[%c0_11, %c0_12, %c0_13] : memref<1x8x256xf32, #tpu.memory_space<vmem>>, vector<1x8x256xf32>
    %26 = vector.shape_cast %25 : vector<1x8x256xf32> to vector<8x256xf32>
    %27 = vector.shape_cast %24 : vector<8x256xf32> to vector<1x8x256xf32>
    tpu.vector_store %arg3[%c0_11, %c0_12, %c0_13], %27 {strides = array<i32>} : memref<1x8x256xf32, #tpu.memory_space<vmem>>, vector<1x8x256xf32>,
    return
  }
  func.func @transform_0(%arg0: i32) -> (i32, i32, i32) {
    %c0_i32 = arith.constant 0 : i32
    %c0_i32_0 = arith.constant 0 : i32
    %c0_i32_1 = arith.constant 0 : i32
    return %arg0, %c0_i32, %c0_i32_0 : i32, i32, i32
  }
  func.func @transform_1(%arg0: i32) -> (i32, i32) {
    %c0_i32 = arith.constant 0 : i32
    %c0_i32_0 = arith.constant 0 : i32
    %c0_i32_1 = arith.constant 0 : i32
    return %c0_i32, %c0_i32_0 : i32, i32
  }
  func.func @transform_2(%arg0: i32) -> (i32, i32, i32) {
    %c0_i32 = arith.constant 0 : i32
    %c0_i32_0 = arith.constant 0 : i32
    %c0_i32_1 = arith.constant 0 : i32
    return %arg0, %c0_i32, %c0_i32_0 : i32, i32, i32
  }
}

</mosaic_0001>

<llo_original>
// kernel: unet_level_forward.8
$region0: #{unet_level_forward.8}
  #allocation0 [shape = 'u32[]', space=smem, size = 0x4, offset = 0x4, fixed_abs, tag = 'smem constant byte address 0x4 - core index']
  #allocation1 [shape = 'u32[144,128]{1,0:T(1,128)}', space=vmem, size = 0x12000, scoped, tag = 'internal scratch']
  %s0 = inlined_call_operand.vmem [shape: f32[2,36,256], index: 0, kind: input, shape index: {}]
  %s1 = inlined_call_operand.vmem [shape: f32[8,36], index: 1, kind: input, shape index: {}]
  %s2 = inlined_call_operand.vmem [shape: f32[2,8,256], index: 2, kind: output, shape index: {}]
  %s3 = sld [smem:[#allocation0]]
  $region41: #{unet_level_forward.8} parent=0
    _
  %s5 = ssub.s32 1, %s3
  %s6 = scalar_select 0, %s5, %s3
  loop: start=0, step=1, limit=4
  $region2: #{unet_level_forward.8} parent=0 // loop_pre_header
    _
  $region3: #{unet_level_forward.8} parent=0 // loop_header
    %s8 = sphi 0, %s12
    %p9 = scmp.ge.s32.totalorder %s8, 4
    %s18 = sphi 0, %s20
    %s21 = sphi 0, %s18
    %s22 = sphi 0, %s21
    %s38 = sphi 0, %s22
    %s42 = sphi 0, %s42
    %s44 = sphi 0, %s42
    %s45 = sphi 0, %s44
    %s59 = sphi 0, %s45
    %s65 = sphi 0, %s67
    %s68 = sphi 0, %s65
    %s69 = sphi 0, %s68
    %s85 = sphi 0, %s69
  $region4: #{unet_level_forward.8} parent=0 // loop_header_branch
    %11 = sbr.rel (%p9) target = $region8
  $region5: #{unet_level_forward.8} parent=0 // loop_body
    %s13 = ssub.s32 %s8, 1
    %s14 = ssub.s32 %s8, 2
    %s15 = sadd.s32 %s8, 1
    %s16 = ssub.s32 %s8, %s15
    %p17 = scmp.eq.s32.totalorder %s16, 0
    %s19 = sadd.s32 %s18, 1
    %s20 = scalar_select %p17, %s18, %s19
    %p23 = pneg %p17
    %p24 = scmp.eq.s32.totalorder %s8, 1
    %p25 = por %p23, %p24
    %p26 = scmp.ne.s32.totalorder %s18, %s21
    %p27 = scmp.eq.s32.totalorder %s8, 0
    %p28 = por %p26, %p27
    %p29 = scmp.ne.s32.totalorder %s18, %s21
    %p30 = scmp.eq.s32.totalorder %s13, 1
    %p31 = por %p29, %p30
    %p32 = scmp.ne.s32.totalorder %s21, %s22
    %p33 = scmp.eq.s32.totalorder %s13, 0
    %p34 = por %p32, %p33
    %p35 = scmp.ne.s32.totalorder %s21, %s22
    %p36 = scmp.eq.s32.totalorder %s14, 1
    %p37 = por %p35, %p36
    %p39 = scmp.ne.s32.totalorder %s22, %s38
    %p40 = scmp.eq.s32.totalorder %s14, 0
    %p41 = por %p39, %p40
    %s43 = sadd.s32 %s42, 1
    %p46 = scmp.eq.s32.totalorder %s8, 1
    %p47 = scmp.ne.s32.totalorder %s42, %s44
    %p48 = scmp.eq.s32.totalorder %s8, 0
    %p49 = por %p47, %p48
    %p50 = scmp.ne.s32.totalorder %s42, %s44
    %p51 = scmp.eq.s32.totalorder %s13, 1
    %p52 = por %p50, %p51
    %p53 = scmp.ne.s32.totalorder %s44, %s45
    %p54 = scmp.eq.s32.totalorder %s13, 0
    %p55 = por %p53, %p54
    %p56 = scmp.ne.s32.totalorder %s44, %s45
    %p57 = scmp.eq.s32.totalorder %s14, 1
    %p58 = por %p56, %p57
    %p60 = scmp.ne.s32.totalorder %s45, %s59
    %p61 = scmp.eq.s32.totalorder %s14, 0
    %p62 = por %p60, %p61
    %s63 = ssub.s32 %s8, %s15
    %p64 = scmp.eq.s32.totalorder %s63, 0
    %s66 = sadd.s32 %s65, 1
    %s67 = scalar_select %p64, %s65, %s66
    %p70 = pneg %p64
    %p71 = scmp.eq.s32.totalorder %s8, 1
    %p72 = por %p70, %p71
    %p73 = scmp.ne.s32.totalorder %s65, %s68
    %p74 = scmp.eq.s32.totalorder %s8, 0
    %p75 = por %p73, %p74
    %p76 = scmp.ne.s32.totalorder %s65, %s68
    %p77 = scmp.eq.s32.totalorder %s13, 1
    %p78 = por %p76, %p77
    %p79 = scmp.ne.s32.totalorder %s68, %s69
    %p80 = scmp.eq.s32.totalorder %s13, 0
    %p81 = por %p79, %p80
    %p82 = scmp.ne.s32.totalorder %s68, %s69
    %p83 = scmp.eq.s32.totalorder %s14, 1
    %p84 = por %p82, %p83
    %p86 = scmp.ne.s32.totalorder %s69, %s85
    %p87 = scmp.eq.s32.totalorder %s14, 0
    %p88 = por %p86, %p87
    %p89 = scmp.le.s32.totalorder 1, %s8
    %p90 = scmp.lt.s32.totalorder %s8, 3
    %p91 = pnand %p89, %p90
    %p92 = pneg %p91
    // Predicated region
    $region9: #{unet_level_forward.8} parent=5 // pred_check
      _
    $region10: #{unet_level_forward.8} parent=5 // pred_check_branch
      %94 = sbr.rel (%p91) target = $region12
    $region11: #{unet_level_forward.8} parent=5 // pred_region
      %s95 = ssub.s32 %s8, 1
      // Predicated region
      $region13: #{unet_level_forward.8} parent=11 // pred_check
        %p96 = pneg %p55
      $region14: #{unet_level_forward.8} parent=11 // pred_check_branch
        %98 = sbr.rel (%p96) target = $region16
      $region15: #{unet_level_forward.8} parent=11 // pred_region
        _
      $region16: #{unet_level_forward.8} parent=11 // pred_fallthru
        _
    $region12: #{unet_level_forward.8} parent=5 // pred_fallthru
      _
    %p99 = scmp.lt.s32.totalorder %s8, 2
    // Predicated region
    $region17: #{unet_level_forward.8} parent=5 // pred_check
      %p100 = pneg %p99
    $region18: #{unet_level_forward.8} parent=5 // pred_check_branch
      %102 = sbr.rel (%p100) target = $region20
    $region19: #{unet_level_forward.8} parent=5 // pred_region
      // Predicated region
      $region21: #{unet_level_forward.8} parent=19 // pred_check
        %p103 = pneg %p28
      $region22: #{unet_level_forward.8} parent=19 // pred_check_branch
        %105 = sbr.rel (%p103) target = $region24
      $region23: #{unet_level_forward.8} parent=19 // pred_region
        %p106 = scmp.lt.s32.totalorder %s8, 1
        %s107 = scalar_select %p106, %s8, 1
        %s108 = smul.addr %s107, 10
        %s109 = smul.addr %s108, 8
        %s110 = scalar_lea.vmem %s0, %s109
      $region24: #{unet_level_forward.8} parent=19 // pred_fallthru
        _
    $region20: #{unet_level_forward.8} parent=5 // pred_fallthru
      _
    %p111 = scmp.le.s32.totalorder 1, %s8
    %p112 = scmp.lt.s32.totalorder %s8, 3
    %p113 = pnand %p111, %p112
    %p114 = pneg %p113
    // Predicated region
    $region25: #{unet_level_forward.8} parent=5 // pred_check
      _
    $region26: #{unet_level_forward.8} parent=5 // pred_check_branch
      %116 = sbr.rel (%p113) target = $region28
    $region27: #{unet_level_forward.8} parent=5 // pred_region
      %s117 = ssub.s32 %s8, 1
      %p118 = scmp.lt.s32.totalorder %s13, 1
      %s119 = scalar_select %p118, %s13, 1
      %s120 = smul.addr %s119, 10
      %s121 = smul.addr %s120, 8
      %s122 = scalar_lea.vmem %s0, %s121
      %p123 = pneg %p34
      %p124 = pneg %p31
      %p125 = pneg %p55
      %p126 = pneg %p52
      %p127 = pneg %p81
      %p128 = pneg %p78
      %p129 = scmp.lt.s32.totalorder %s13, 1
      %s130 = scalar_select %p129, %s13, 1
      %s131 = smul.addr %s130, 2
      %s132 = smul.addr %s131, 8
      %s133 = scalar_lea.vmem %s2, %s132
      %p134 = scmp.lt.s32.totalorder %s13, 1
      %s135 = scalar_select %p134, %s13, 1
      %s136 = smul.addr %s135, 10
      %s137 = smul.addr %s136, 8
      %s138 = scalar_lea.vmem %s0, %s137
      %p139 = scmp.lt.s32.totalorder %s13, 1
      %s140 = scalar_select %p139, %s13, 1
      %s141 = smul.addr %s140, 2
      %s142 = smul.addr %s141, 8
      %s143 = scalar_lea.vmem %s2, %s142
      %v144 = vld [vmem:[%s138] sm:$0xff]
      %v145 = vld [vmem:[%s138 + $0x8] sm:$0xff]
      %v146 = vld [vmem:[%s138 + $0x10] sm:$0xff]
      %v147 = vld [vmem:[%s138 + $0x18] sm:$0xff]
      %v148 = vld [vmem:[%s138 + $0x20] sm:$0xff]
      %v149 = vld [vmem:[%s138 + $0x28] sm:$0xff]
      %v150 = vld [vmem:[%s138 + $0x30] sm:$0xff]
      %v151 = vld [vmem:[%s138 + $0x38] sm:$0xff]
      %v152 = vld [vmem:[%s138 + $0x40] sm:$0xf]
      %v153 = vld [vmem:[%s138 + $0x48] sm:$0xf]
      %v154 = vld [vmem:[%s1] sm:$0xff]
      %vm155 = vcmask 293888
      %v157 = vsel %vm155, %v154, 0
      %vm159 = vcmask 1043456
      %v161 = vsel %vm159, %v152, 0
      %v164 = vsel %vm159, %v153, 0
      %166 = vmatprep.subr.mxu0 %v145
      %167 = vmatpush1.msra.mxu0 %v144
      %168 = vmatprep.subr.mxu0 %v147
      %169 = vmatpush1.msra.mxu0 %v146
      %170 = vmatprep.subr.mxu0 %v149
      %171 = vmatpush1.msra.mxu0 %v148
      %172 = vmatprep.subr.mxu0 %v151
      %173 = vmatpush1.msra.mxu0 %v150
      %174 = vmatprep.subr.mxu0 %v164
      %175 = vmatpush1.msra.mxu0 %v161
      %176 = vmatprep.subr.mxu0 0.0
      %177 = vmatpush1.msra.mxu0 0.0
      %178 = vmatprep.subr.mxu0 0.0
      %179 = vmatpush1.msra.mxu0 0.0
      %180 = vmatprep.subr.mxu0 0.0
      %181 = vmatpush1.msra.mxu0 0.0
      %182 = vmatprep.subr.mxu0 0.0
      %183 = vmatpush1.msra.mxu0 0.0
      %184 = vmatprep.subr.mxu0 0.0
      %185 = vmatpush1.msra.mxu0 0.0
      %186 = vmatprep.subr.mxu0 0.0
      %187 = vmatpush1.msra.mxu0 0.0
      %188 = vmatprep.subr.mxu0 0.0
      %189 = vmatpush1.msra.mxu0 0.0
      %190 = vmatprep.subr.mxu0 0.0
      %191 = vmatpush1.msra.mxu0 0.0
      %192 = vmatprep.subr.mxu0 0.0
      %193 = vmatpush1.msra.mxu0 0.0
      %194 = vmatprep.subr.mxu0 0.0
      %195 = vmatpush1.msra.mxu0 0.0
      %196 = vmatprep.subr.mxu0 0.0
      %197 = vmatpush1.msra.mxu0 0.0
      %198 = vmatprep.subr.mxu0 0.0
      %199 = vmatpush1.msra.mxu0 0.0
      %200 = vmatprep.subr.mxu0 0.0
      %201 = vmatpush1.msra.mxu0 0.0
      %202 = vmatprep.subr.mxu0 0.0
      %203 = vmatpush1.msra.mxu0 0.0
      %204 = vmatprep.subr.mxu0 0.0
      %205 = vmatpush1.msra.mxu0 0.0
      %206 = vmatprep.subr.mxu0 0.0
      %207 = vmatpush1.msra.mxu0 0.0
      %208 = vmatprep.subr.mxu0 0.0
      %209 = vmatpush1.msra.mxu0 0.0
      %210 = vmatprep.subr.mxu0 0.0
      %211 = vmatpush1.msra.mxu0 0.0
      %212 = vmatprep.subr.mxu0 0.0
      %213 = vmatpush1.msra.mxu0 0.0
      %214 = vmatprep.subr.mxu0 0.0
      %215 = vmatpush1.msra.mxu0 0.0
      %216 = vmatprep.subr.mxu0 0.0
      %217 = vmatpush1.msra.mxu0 0.0
      %218 = vmatprep.subr.mxu0 0.0
      %219 = vmatpush1.msra.mxu0 0.0
      %220 = vmatprep.subr.mxu0 0.0
      %221 = vmatpush1.msra.mxu0 0.0
      %222 = vmatprep.subr.mxu0 0.0
      %223 = vmatpush1.msra.mxu0 0.0
      %224 = vmatprep.subr.mxu0 0.0
      %225 = vmatpush1.msra.mxu0 0.0
      %226 = vmatprep.subr.mxu0 0.0
      %227 = vmatpush1.msra.mxu0 0.0
      %228 = vmatprep.subr.mxu0 0.0
      %229 = vmatpush1.msra.mxu0 0.0
      %230 = vmatprep.mubr.f32.mxu0 0.0
      %231 = vmatmul.mubr.f32.gmra.mrb[0].mxu0 %v157
      %v232 = vpop.f32.mrb[0].mxu0
      %v233 = vadd.f32 0.0, %v232
      %v234 = vpop.f32.mrb[0].mxu0
      %v235 = vadd.f32 0.0, %v234
      %236 = vdwg.mxu0
      %v237 = vadd.f32 %v233, %v235
      %238 = vadd.xlane.f32.xlu0 %v237
      %v239 = vpop.xlane.xlu0 %238
      %v240 = vrcp.pop 256.0
      %v241 = vmul.f32 %v239, %v240
      %v242 = vsub.f32 %v233, %v241
      %v243 = vsub.f32 %v235, %v241
      %v244 = vmul.f32 %v242, %v242
      %v245 = vmul.f32 %v243, %v243
      %v246 = vadd.f32 %v244, %v245
      %247 = vadd.xlane.f32.xlu0 %v246
      %v248 = vpop.xlane.xlu0 %247
      %v249 = vmul.f32 %v248, %v240
      %v250 = vadd.f32 %v249, 1e-05
      %v251 = vrsqrt.pop %v250
      %v252 = vmul.f32 %v250, %v251
      %vm253 = vcmp.eq.f32.partialorder %v250, inf
      %v254 = vsel %vm253, %v250, %v252
      %vm255 = vcmp.eq.f32.partialorder %v250, 0.0
      %v256 = vand.u32 %v250, 2147483648
      %v257 = vsel %vm255, %v256, %v254
      %v258 = vrcp.pop %v257
      %v259 = vmul.f32 %v242, %v258
      %v260 = vmul.f32 %v243, %v258
      %vm261 = vcmp.ge.f32.partialorder %v259, 0.0
      %vm262 = vcmp.ge.f32.partialorder %v260, 0.0
      %v263 = vmul.f32 %v259, 0.2
      %v264 = vmul.f32 %v260, 0.2
      %v265 = vsel %vm261, %v259, %v263
      %v266 = vsel %vm262, %v260, %v264
      %267 = vst [vmem:[%s143] sm:$0xff] %v265
      %268 = vst [vmem:[%s143 + $0x8] sm:$0xff] %v266
      %p269 = scmp.lt.s32.totalorder %s13, 1
      %s270 = scalar_select %p269, %s13, 1
      %s271 = smul.addr %s270, 2
      %s272 = smul.addr %s271, 8
      %s273 = scalar_lea.vmem %s2, %s272
      // Predicated region
      $region29: #{unet_level_forward.8} parent=27 // pred_check
        %p274 = pneg %p78
      $region30: #{unet_level_forward.8} parent=27 // pred_check_branch
        %276 = sbr.rel (%p274) target = $region32
      $region31: #{unet_level_forward.8} parent=27 // pred_region
        _
      $region32: #{unet_level_forward.8} parent=27 // pred_fallthru
        _
    $region28: #{unet_level_forward.8} parent=5 // pred_fallthru
      _
    %p277 = scmp.le.s32.totalorder 2, %s8
    // Predicated region
    $region33: #{unet_level_forward.8} parent=5 // pred_check
      %p278 = pneg %p277
    $region34: #{unet_level_forward.8} parent=5 // pred_check_branch
      %280 = sbr.rel (%p278) target = $region36
    $region35: #{unet_level_forward.8} parent=5 // pred_region
      %s281 = ssub.s32 %s8, 2
      // Predicated region
      $region37: #{unet_level_forward.8} parent=35 // pred_check
        %p282 = pneg %p84
      $region38: #{unet_level_forward.8} parent=35 // pred_check_branch
        %284 = sbr.rel (%p282) target = $region40
      $region39: #{unet_level_forward.8} parent=35 // pred_region
        %p285 = scmp.lt.s32.totalorder %s14, 1
        %s286 = scalar_select %p285, %s14, 1
        %s287 = smul.addr %s286, 2
        %s288 = smul.addr %s287, 8
        %s289 = scalar_lea.vmem %s2, %s288
      $region40: #{unet_level_forward.8} parent=35 // pred_fallthru
        _
    $region36: #{unet_level_forward.8} parent=5 // pred_fallthru
      _
  $region6: #{unet_level_forward.8} parent=0 // loop_footer
    %s12 = sadd.s32 1, %s8
  $region7: #{unet_level_forward.8} parent=0 // loop_footer_branch
    %7 = sbr.rel target = $region3
  $region8: #{unet_level_forward.8} parent=0 // loop_exit
    _

// kernel: unet_level_forward.9
$region0: #{unet_level_forward.9}
  #allocation0 [shape = 'u32[]', space=smem, size = 0x4, offset = 0x4, fixed_abs, tag = 'smem constant byte address 0x4 - core index']
  #allocation1 [shape = 'u32[144,128]{1,0:T(1,128)}', space=vmem, size = 0x12000, scoped, tag = 'internal scratch']
  %s0 = inlined_call_operand.vmem [shape: f32[2,72,256], index: 0, kind: input, shape index: {}]
  %s1 = inlined_call_operand.vmem [shape: f32[8,72], index: 1, kind: input, shape index: {}]
  %s2 = inlined_call_operand.vmem [shape: f32[2,8,256], index: 2, kind: output, shape index: {}]
  %s3 = sld [smem:[#allocation0]]
  $region41: #{unet_level_forward.9} parent=0
    _
  %s5 = ssub.s32 1, %s3
  %s6 = scalar_select 0, %s5, %s3
  loop: start=0, step=1, limit=4
  $region2: #{unet_level_forward.9} parent=0 // loop_pre_header
    _
  $region3: #{unet_level_forward.9} parent=0 // loop_header
    %s8 = sphi 0, %s12
    %p9 = scmp.ge.s32.totalorder %s8, 4
    %s18 = sphi 0, %s20
    %s21 = sphi 0, %s18
    %s22 = sphi 0, %s21
    %s38 = sphi 0, %s22
    %s42 = sphi 0, %s42
    %s44 = sphi 0, %s42
    %s45 = sphi 0, %s44
    %s59 = sphi 0, %s45
    %s65 = sphi 0, %s67
    %s68 = sphi 0, %s65
    %s69 = sphi 0, %s68
    %s85 = sphi 0, %s69
  $region4: #{unet_level_forward.9} parent=0 // loop_header_branch
    %11 = sbr.rel (%p9) target = $region8
  $region5: #{unet_level_forward.9} parent=0 // loop_body
    %s13 = ssub.s32 %s8, 1
    %s14 = ssub.s32 %s8, 2
    %s15 = sadd.s32 %s8, 1
    %s16 = ssub.s32 %s8, %s15
    %p17 = scmp.eq.s32.totalorder %s16, 0
    %s19 = sadd.s32 %s18, 1
    %s20 = scalar_select %p17, %s18, %s19
    %p23 = pneg %p17
    %p24 = scmp.eq.s32.totalorder %s8, 1
    %p25 = por %p23, %p24
    %p26 = scmp.ne.s32.totalorder %s18, %s21
    %p27 = scmp.eq.s32.totalorder %s8, 0
    %p28 = por %p26, %p27
    %p29 = scmp.ne.s32.totalorder %s18, %s21
    %p30 = scmp.eq.s32.totalorder %s13, 1
    %p31 = por %p29, %p30
    %p32 = scmp.ne.s32.totalorder %s21, %s22
    %p33 = scmp.eq.s32.totalorder %s13, 0
    %p34 = por %p32, %p33
    %p35 = scmp.ne.s32.totalorder %s21, %s22
    %p36 = scmp.eq.s32.totalorder %s14, 1
    %p37 = por %p35, %p36
    %p39 = scmp.ne.s32.totalorder %s22, %s38
    %p40 = scmp.eq.s32.totalorder %s14, 0
    %p41 = por %p39, %p40
    %s43 = sadd.s32 %s42, 1
    %p46 = scmp.eq.s32.totalorder %s8, 1
    %p47 = scmp.ne.s32.totalorder %s42, %s44
    %p48 = scmp.eq.s32.totalorder %s8, 0
    %p49 = por %p47, %p48
    %p50 = scmp.ne.s32.totalorder %s42, %s44
    %p51 = scmp.eq.s32.totalorder %s13, 1
    %p52 = por %p50, %p51
    %p53 = scmp.ne.s32.totalorder %s44, %s45
    %p54 = scmp.eq.s32.totalorder %s13, 0
    %p55 = por %p53, %p54
    %p56 = scmp.ne.s32.totalorder %s44, %s45
    %p57 = scmp.eq.s32.totalorder %s14, 1
    %p58 = por %p56, %p57
    %p60 = scmp.ne.s32.totalorder %s45, %s59
    %p61 = scmp.eq.s32.totalorder %s14, 0
    %p62 = por %p60, %p61
    %s63 = ssub.s32 %s8, %s15
    %p64 = scmp.eq.s32.totalorder %s63, 0
    %s66 = sadd.s32 %s65, 1
    %s67 = scalar_select %p64, %s65, %s66
    %p70 = pneg %p64
    %p71 = scmp.eq.s32.totalorder %s8, 1
    %p72 = por %p70, %p71
    %p73 = scmp.ne.s32.totalorder %s65, %s68
    %p74 = scmp.eq.s32.totalorder %s8, 0
    %p75 = por %p73, %p74
    %p76 = scmp.ne.s32.totalorder %s65, %s68
    %p77 = scmp.eq.s32.totalorder %s13, 1
    %p78 = por %p76, %p77
    %p79 = scmp.ne.s32.totalorder %s68, %s69
    %p80 = scmp.eq.s32.totalorder %s13, 0
    %p81 = por %p79, %p80
    %p82 = scmp.ne.s32.totalorder %s68, %s69
    %p83 = scmp.eq.s32.totalorder %s14, 1
    %p84 = por %p82, %p83
    %p86 = scmp.ne.s32.totalorder %s69, %s85
    %p87 = scmp.eq.s32.totalorder %s14, 0
    %p88 = por %p86, %p87
    %p89 = scmp.le.s32.totalorder 1, %s8
    %p90 = scmp.lt.s32.totalorder %s8, 3
    %p91 = pnand %p89, %p90
    %p92 = pneg %p91
    // Predicated region
    $region9: #{unet_level_forward.9} parent=5 // pred_check
      _
    $region10: #{unet_level_forward.9} parent=5 // pred_check_branch
      %94 = sbr.rel (%p91) target = $region12
    $region11: #{unet_level_forward.9} parent=5 // pred_region
      %s95 = ssub.s32 %s8, 1
      // Predicated region
      $region13: #{unet_level_forward.9} parent=11 // pred_check
        %p96 = pneg %p55
      $region14: #{unet_level_forward.9} parent=11 // pred_check_branch
        %98 = sbr.rel (%p96) target = $region16
      $region15: #{unet_level_forward.9} parent=11 // pred_region
        _
      $region16: #{unet_level_forward.9} parent=11 // pred_fallthru
        _
    $region12: #{unet_level_forward.9} parent=5 // pred_fallthru
      _
    %p99 = scmp.lt.s32.totalorder %s8, 2
    // Predicated region
    $region17: #{unet_level_forward.9} parent=5 // pred_check
      %p100 = pneg %p99
    $region18: #{unet_level_forward.9} parent=5 // pred_check_branch
      %102 = sbr.rel (%p100) target = $region20
    $region19: #{unet_level_forward.9} parent=5 // pred_region
      // Predicated region
      $region21: #{unet_level_forward.9} parent=19 // pred_check
        %p103 = pneg %p28
      $region22: #{unet_level_forward.9} parent=19 // pred_check_branch
        %105 = sbr.rel (%p103) target = $region24
      $region23: #{unet_level_forward.9} parent=19 // pred_region
        %p106 = scmp.lt.s32.totalorder %s8, 1
        %s107 = scalar_select %p106, %s8, 1
        %s108 = smul.addr %s107, 18
        %s109 = smul.addr %s108, 8
        %s110 = scalar_lea.vmem %s0, %s109
      $region24: #{unet_level_forward.9} parent=19 // pred_fallthru
        _
    $region20: #{unet_level_forward.9} parent=5 // pred_fallthru
      _
    %p111 = scmp.le.s32.totalorder 1, %s8
    %p112 = scmp.lt.s32.totalorder %s8, 3
    %p113 = pnand %p111, %p112
    %p114 = pneg %p113
    // Predicated region
    $region25: #{unet_level_forward.9} parent=5 // pred_check
      _
    $region26: #{unet_level_forward.9} parent=5 // pred_check_branch
      %116 = sbr.rel (%p113) target = $region28
    $region27: #{unet_level_forward.9} parent=5 // pred_region
      %s117 = ssub.s32 %s8, 1
      %p118 = scmp.lt.s32.totalorder %s13, 1
      %s119 = scalar_select %p118, %s13, 1
      %s120 = smul.addr %s119, 18
      %s121 = smul.addr %s120, 8
      %s122 = scalar_lea.vmem %s0, %s121
      %p123 = pneg %p34
      %p124 = pneg %p31
      %p125 = pneg %p55
      %p126 = pneg %p52
      %p127 = pneg %p81
      %p128 = pneg %p78
      %p129 = scmp.lt.s32.totalorder %s13, 1
      %s130 = scalar_select %p129, %s13, 1
      %s131 = smul.addr %s130, 2
      %s132 = smul.addr %s131, 8
      %s133 = scalar_lea.vmem %s2, %s132
      %p134 = scmp.lt.s32.totalorder %s13, 1
      %s135 = scalar_select %p134, %s13, 1
      %s136 = smul.addr %s135, 18
      %s137 = smul.addr %s136, 8
      %s138 = scalar_lea.vmem %s0, %s137
      %p139 = scmp.lt.s32.totalorder %s13, 1
      %s140 = scalar_select %p139, %s13, 1
      %s141 = smul.addr %s140, 2
      %s142 = smul.addr %s141, 8
      %s143 = scalar_lea.vmem %s2, %s142
      %v144 = vld [vmem:[%s138] sm:$0xff]
      %v145 = vld [vmem:[%s138 + $0x8] sm:$0xff]
      %v146 = vld [vmem:[%s138 + $0x10] sm:$0xff]
      %v147 = vld [vmem:[%s138 + $0x18] sm:$0xff]
      %v148 = vld [vmem:[%s138 + $0x20] sm:$0xff]
      %v149 = vld [vmem:[%s138 + $0x28] sm:$0xff]
      %v150 = vld [vmem:[%s138 + $0x30] sm:$0xff]
      %v151 = vld [vmem:[%s138 + $0x38] sm:$0xff]
      %v152 = vld [vmem:[%s138 + $0x40] sm:$0xff]
      %v153 = vld [vmem:[%s138 + $0x48] sm:$0xff]
      %v154 = vld [vmem:[%s138 + $0x50] sm:$0xff]
      %v155 = vld [vmem:[%s138 + $0x58] sm:$0xff]
      %v156 = vld [vmem:[%s138 + $0x60] sm:$0xff]
      %v157 = vld [vmem:[%s138 + $0x68] sm:$0xff]
      %v158 = vld [vmem:[%s138 + $0x70] sm:$0xff]
      %v159 = vld [vmem:[%s138 + $0x78] sm:$0xff]
      %v160 = vld [vmem:[%s138 + $0x80] sm:$0xff]
      %v161 = vld [vmem:[%s138 + $0x88] sm:$0xff]
      %v162 = vld [vmem:[%s1] sm:$0xff]
      %vm163 = vcmask 588800
      %v165 = vsel %vm163, %v162, 0
      %167 = vmatprep.subr.mxu0 %v145
      %168 = vmatpush1.msra.mxu0 %v144
      %169 = vmatprep.subr.mxu0 %v147
      %170 = vmatpush1.msra.mxu0 %v146
      %171 = vmatprep.subr.mxu0 %v149
      %172 = vmatpush1.msra.mxu0 %v148
      %173 = vmatprep.subr.mxu0 %v151
      %174 = vmatpush1.msra.mxu0 %v150
      %175 = vmatprep.subr.mxu0 %v153
      %176 = vmatpush1.msra.mxu0 %v152
      %177 = vmatprep.subr.mxu0 %v155
      %178 = vmatpush1.msra.mxu0 %v154
      %179 = vmatprep.subr.mxu0 %v157
      %180 = vmatpush1.msra.mxu0 %v156
      %181 = vmatprep.subr.mxu0 %v159
      %182 = vmatpush1.msra.mxu0 %v158
      %183 = vmatprep.subr.mxu0 %v161
      %184 = vmatpush1.msra.mxu0 %v160
      %185 = vmatprep.subr.mxu0 0.0
      %186 = vmatpush1.msra.mxu0 0.0
      %187 = vmatprep.subr.mxu0 0.0
      %188 = vmatpush1.msra.mxu0 0.0
      %189 = vmatprep.subr.mxu0 0.0
      %190 = vmatpush1.msra.mxu0 0.0
      %191 = vmatprep.subr.mxu0 0.0
      %192 = vmatpush1.msra.mxu0 0.0
      %193 = vmatprep.subr.mxu0 0.0
      %194 = vmatpush1.msra.mxu0 0.0
      %195 = vmatprep.subr.mxu0 0.0
      %196 = vmatpush1.msra.mxu0 0.0
      %197 = vmatprep.subr.mxu0 0.0
      %198 = vmatpush1.msra.mxu0 0.0
      %199 = vmatprep.subr.mxu0 0.0
      %200 = vmatpush1.msra.mxu0 0.0
      %201 = vmatprep.subr.mxu0 0.0
      %202 = vmatpush1.msra.mxu0 0.0
      %203 = vmatprep.subr.mxu0 0.0
      %204 = vmatpush1.msra.mxu0 0.0
      %205 = vmatprep.subr.mxu0 0.0
      %206 = vmatpush1.msra.mxu0 0.0
      %207 = vmatprep.subr.mxu0 0.0
      %208 = vmatpush1.msra.mxu0 0.0
      %209 = vmatprep.subr.mxu0 0.0
      %210 = vmatpush1.msra.mxu0 0.0
      %211 = vmatprep.subr.mxu0 0.0
      %212 = vmatpush1.msra.mxu0 0.0
      %213 = vmatprep.subr.mxu0 0.0
      %214 = vmatpush1.msra.mxu0 0.0
      %215 = vmatprep.subr.mxu0 0.0
      %216 = vmatpush1.msra.mxu0 0.0
      %217 = vmatprep.subr.mxu0 0.0
      %218 = vmatpush1.msra.mxu0 0.0
      %219 = vmatprep.subr.mxu0 0.0
      %220 = vmatpush1.msra.mxu0 0.0
      %221 = vmatprep.subr.mxu0 0.0
      %222 = vmatpush1.msra.mxu0 0.0
      %223 = vmatprep.subr.mxu0 0.0
      %224 = vmatpush1.msra.mxu0 0.0
      %225 = vmatprep.subr.mxu0 0.0
      %226 = vmatpush1.msra.mxu0 0.0
      %227 = vmatprep.subr.mxu0 0.0
      %228 = vmatpush1.msra.mxu0 0.0
      %229 = vmatprep.subr.mxu0 0.0
      %230 = vmatpush1.msra.mxu0 0.0
      %231 = vmatprep.mubr.f32.mxu0 0.0
      %232 = vmatmul.mubr.f32.gmra.mrb[0].mxu0 %v165
      %v233 = vpop.f32.mrb[0].mxu0
      %v234 = vadd.f32 0.0, %v233
      %v235 = vpop.f32.mrb[0].mxu0
      %v236 = vadd.f32 0.0, %v235
      %237 = vdwg.mxu0
      %v238 = vadd.f32 %v234, %v236
      %239 = vadd.xlane.f32.xlu0 %v238
      %v240 = vpop.xlane.xlu0 %239
      %v241 = vrcp.pop 256.0
      %v242 = vmul.f32 %v240, %v241
      %v243 = vsub.f32 %v234, %v242
      %v244 = vsub.f32 %v236, %v242
      %v245 = vmul.f32 %v243, %v243
      %v246 = vmul.f32 %v244, %v244
      %v247 = vadd.f32 %v245, %v246
      %248 = vadd.xlane.f32.xlu0 %v247
      %v249 = vpop.xlane.xlu0 %248
      %v250 = vmul.f32 %v249, %v241
      %v251 = vadd.f32 %v250, 1e-05
      %v252 = vrsqrt.pop %v251
      %v253 = vmul.f32 %v251, %v252
      %vm254 = vcmp.eq.f32.partialorder %v251, inf
      %v255 = vsel %vm254, %v251, %v253
      %vm256 = vcmp.eq.f32.partialorder %v251, 0.0
      %v257 = vand.u32 %v251, 2147483648
      %v258 = vsel %vm256, %v257, %v255
      %v259 = vrcp.pop %v258
      %v260 = vmul.f32 %v243, %v259
      %v261 = vmul.f32 %v244, %v259
      %vm262 = vcmp.ge.f32.partialorder %v260, 0.0
      %vm263 = vcmp.ge.f32.partialorder %v261, 0.0
      %v264 = vmul.f32 %v260, 0.2
      %v265 = vmul.f32 %v261, 0.2
      %v266 = vsel %vm262, %v260, %v264
      %v267 = vsel %vm263, %v261, %v265
      %268 = vst [vmem:[%s143] sm:$0xff] %v266
      %269 = vst [vmem:[%s143 + $0x8] sm:$0xff] %v267
      %p270 = scmp.lt.s32.totalorder %s13, 1
      %s271 = scalar_select %p270, %s13, 1
      %s272 = smul.addr %s271, 2
      %s273 = smul.addr %s272, 8
      %s274 = scalar_lea.vmem %s2, %s273
      // Predicated region
      $region29: #{unet_level_forward.9} parent=27 // pred_check
        %p275 = pneg %p78
      $region30: #{unet_level_forward.9} parent=27 // pred_check_branch
        %277 = sbr.rel (%p275) target = $region32
      $region31: #{unet_level_forward.9} parent=27 // pred_region
        _
      $region32: #{unet_level_forward.9} parent=27 // pred_fallthru
        _
    $region28: #{unet_level_forward.9} parent=5 // pred_fallthru
      _
    %p278 = scmp.le.s32.totalorder 2, %s8
    // Predicated region
    $region33: #{unet_level_forward.9} parent=5 // pred_check
      %p279 = pneg %p278
    $region34: #{unet_level_forward.9} parent=5 // pred_check_branch
      %281 = sbr.rel (%p279) target = $region36
    $region35: #{unet_level_forward.9} parent=5 // pred_region
      %s282 = ssub.s32 %s8, 2
      // Predicated region
      $region37: #{unet_level_forward.9} parent=35 // pred_check
        %p283 = pneg %p84
      $region38: #{unet_level_forward.9} parent=35 // pred_check_branch
        %285 = sbr.rel (%p283) target = $region40
      $region39: #{unet_level_forward.9} parent=35 // pred_region
        %p286 = scmp.lt.s32.totalorder %s14, 1
        %s287 = scalar_select %p286, %s14, 1
        %s288 = smul.addr %s287, 2
        %s289 = smul.addr %s288, 8
        %s290 = scalar_lea.vmem %s2, %s289
      $region40: #{unet_level_forward.9} parent=35 // pred_fallthru
        _
    $region36: #{unet_level_forward.9} parent=5 // pred_fallthru
      _
  $region6: #{unet_level_forward.9} parent=0 // loop_footer
    %s12 = sadd.s32 1, %s8
  $region7: #{unet_level_forward.9} parent=0 // loop_footer_branch
    %7 = sbr.rel target = $region3
  $region8: #{unet_level_forward.9} parent=0 // loop_exit
    _

// kernel: unet_level_forward.10
$region0: #{unet_level_forward.10}
  #allocation0 [shape = 'u32[]', space=smem, size = 0x4, offset = 0x4, fixed_abs, tag = 'smem constant byte address 0x4 - core index']
  #allocation1 [shape = 'u32[144,128]{1,0:T(1,128)}', space=vmem, size = 0x12000, scoped, tag = 'internal scratch']
  %s0 = inlined_call_operand.vmem [shape: f32[2,8,256], index: 0, kind: input, shape index: {}]
  %s1 = inlined_call_operand.vmem [shape: f32[256,64], index: 1, kind: input, shape index: {}]
  %s2 = inlined_call_operand.vmem [shape: f32[2,8,64], index: 2, kind: output, shape index: {}]
  %s3 = sld [smem:[#allocation0]]
  $region41: #{unet_level_forward.10} parent=0
    _
  %s5 = ssub.s32 1, %s3
  %s6 = scalar_select 0, %s5, %s3
  loop: start=0, step=1, limit=4
  $region2: #{unet_level_forward.10} parent=0 // loop_pre_header
    _
  $region3: #{unet_level_forward.10} parent=0 // loop_header
    %s8 = sphi 0, %s12
    %p9 = scmp.ge.s32.totalorder %s8, 4
    %s18 = sphi 0, %s20
    %s21 = sphi 0, %s18
    %s22 = sphi 0, %s21
    %s38 = sphi 0, %s22
    %s42 = sphi 0, %s42
    %s44 = sphi 0, %s42
    %s45 = sphi 0, %s44
    %s59 = sphi 0, %s45
    %s65 = sphi 0, %s67
    %s68 = sphi 0, %s65
    %s69 = sphi 0, %s68
    %s85 = sphi 0, %s69
  $region4: #{unet_level_forward.10} parent=0 // loop_header_branch
    %11 = sbr.rel (%p9) target = $region8
  $region5: #{unet_level_forward.10} parent=0 // loop_body
    %s13 = ssub.s32 %s8, 1
    %s14 = ssub.s32 %s8, 2
    %s15 = sadd.s32 %s8, 1
    %s16 = ssub.s32 %s8, %s15
    %p17 = scmp.eq.s32.totalorder %s16, 0
    %s19 = sadd.s32 %s18, 1
    %s20 = scalar_select %p17, %s18, %s19
    %p23 = pneg %p17
    %p24 = scmp.eq.s32.totalorder %s8, 1
    %p25 = por %p23, %p24
    %p26 = scmp.ne.s32.totalorder %s18, %s21
    %p27 = scmp.eq.s32.totalorder %s8, 0
    %p28 = por %p26, %p27
    %p29 = scmp.ne.s32.totalorder %s18, %s21
    %p30 = scmp.eq.s32.totalorder %s13, 1
    %p31 = por %p29, %p30
    %p32 = scmp.ne.s32.totalorder %s21, %s22
    %p33 = scmp.eq.s32.totalorder %s13, 0
    %p34 = por %p32, %p33
    %p35 = scmp.ne.s32.totalorder %s21, %s22
    %p36 = scmp.eq.s32.totalorder %s14, 1
    %p37 = por %p35, %p36
    %p39 = scmp.ne.s32.totalorder %s22, %s38
    %p40 = scmp.eq.s32.totalorder %s14, 0
    %p41 = por %p39, %p40
    %s43 = sadd.s32 %s42, 1
    %p46 = scmp.eq.s32.totalorder %s8, 1
    %p47 = scmp.ne.s32.totalorder %s42, %s44
    %p48 = scmp.eq.s32.totalorder %s8, 0
    %p49 = por %p47, %p48
    %p50 = scmp.ne.s32.totalorder %s42, %s44
    %p51 = scmp.eq.s32.totalorder %s13, 1
    %p52 = por %p50, %p51
    %p53 = scmp.ne.s32.totalorder %s44, %s45
    %p54 = scmp.eq.s32.totalorder %s13, 0
    %p55 = por %p53, %p54
    %p56 = scmp.ne.s32.totalorder %s44, %s45
    %p57 = scmp.eq.s32.totalorder %s14, 1
    %p58 = por %p56, %p57
    %p60 = scmp.ne.s32.totalorder %s45, %s59
    %p61 = scmp.eq.s32.totalorder %s14, 0
    %p62 = por %p60, %p61
    %s63 = ssub.s32 %s8, %s15
    %p64 = scmp.eq.s32.totalorder %s63, 0
    %s66 = sadd.s32 %s65, 1
    %s67 = scalar_select %p64, %s65, %s66
    %p70 = pneg %p64
    %p71 = scmp.eq.s32.totalorder %s8, 1
    %p72 = por %p70, %p71
    %p73 = scmp.ne.s32.totalorder %s65, %s68
    %p74 = scmp.eq.s32.totalorder %s8, 0
    %p75 = por %p73, %p74
    %p76 = scmp.ne.s32.totalorder %s65, %s68
    %p77 = scmp.eq.s32.totalorder %s13, 1
    %p78 = por %p76, %p77
    %p79 = scmp.ne.s32.totalorder %s68, %s69
    %p80 = scmp.eq.s32.totalorder %s13, 0
    %p81 = por %p79, %p80
    %p82 = scmp.ne.s32.totalorder %s68, %s69
    %p83 = scmp.eq.s32.totalorder %s14, 1
    %p84 = por %p82, %p83
    %p86 = scmp.ne.s32.totalorder %s69, %s85
    %p87 = scmp.eq.s32.totalorder %s14, 0
    %p88 = por %p86, %p87
    %p89 = scmp.le.s32.totalorder 1, %s8
    %p90 = scmp.lt.s32.totalorder %s8, 3
    %p91 = pnand %p89, %p90
    %p92 = pneg %p91
    // Predicated region
    $region9: #{unet_level_forward.10} parent=5 // pred_check
      _
    $region10: #{unet_level_forward.10} parent=5 // pred_check_branch
      %94 = sbr.rel (%p91) target = $region12
    $region11: #{unet_level_forward.10} parent=5 // pred_region
      %s95 = ssub.s32 %s8, 1
      // Predicated region
      $region13: #{unet_level_forward.10} parent=11 // pred_check
        %p96 = pneg %p55
      $region14: #{unet_level_forward.10} parent=11 // pred_check_branch
        %98 = sbr.rel (%p96) target = $region16
      $region15: #{unet_level_forward.10} parent=11 // pred_region
        _
      $region16: #{unet_level_forward.10} parent=11 // pred_fallthru
        _
    $region12: #{unet_level_forward.10} parent=5 // pred_fallthru
      _
    %p99 = scmp.lt.s32.totalorder %s8, 2
    // Predicated region
    $region17: #{unet_level_forward.10} parent=5 // pred_check
      %p100 = pneg %p99
    $region18: #{unet_level_forward.10} parent=5 // pred_check_branch
      %102 = sbr.rel (%p100) target = $region20
    $region19: #{unet_level_forward.10} parent=5 // pred_region
      // Predicated region
      $region21: #{unet_level_forward.10} parent=19 // pred_check
        %p103 = pneg %p28
      $region22: #{unet_level_forward.10} parent=19 // pred_check_branch
        %105 = sbr.rel (%p103) target = $region24
      $region23: #{unet_level_forward.10} parent=19 // pred_region
        %p106 = scmp.lt.s32.totalorder %s8, 1
        %s107 = scalar_select %p106, %s8, 1
        %s108 = smul.addr %s107, 2
        %s109 = smul.addr %s108, 8
        %s110 = scalar_lea.vmem %s0, %s109
      $region24: #{unet_level_forward.10} parent=19 // pred_fallthru
        _
    $region20: #{unet_level_forward.10} parent=5 // pred_fallthru
      _
    %p111 = scmp.le.s32.totalorder 1, %s8
    %p112 = scmp.lt.s32.totalorder %s8, 3
    %p113 = pnand %p111, %p112
    %p114 = pneg %p113
    // Predicated region
    $region25: #{unet_level_forward.10} parent=5 // pred_check
      _
    $region26: #{unet_level_forward.10} parent=5 // pred_check_branch
      %116 = sbr.rel (%p113) target = $region28
    $region27: #{unet_level_forward.10} parent=5 // pred_region
      %s117 = ssub.s32 %s8, 1
      %p118 = scmp.lt.s32.totalorder %s13, 1
      %s119 = scalar_select %p118, %s13, 1
      %s120 = smul.addr %s119, 2
      %s121 = smul.addr %s120, 8
      %s122 = scalar_lea.vmem %s0, %s121
      %p123 = pneg %p34
      %p124 = pneg %p31
      %p125 = pneg %p55
      %p126 = pneg %p52
      %p127 = pneg %p81
      %p128 = pneg %p78
      %p129 = scmp.lt.s32.totalorder %s13, 1
      %s130 = scalar_select %p129, %s13, 1
      %s131 = smul.addr %s130, 8
      %s132 = scalar_lea.vmem %s2, %s131
      %p133 = scmp.lt.s32.totalorder %s13, 1
      %s134 = scalar_select %p133, %s13, 1
      %s135 = smul.addr %s134, 2
      %s136 = smul.addr %s135, 8
      %s137 = scalar_lea.vmem %s0, %s136
      %p138 = scmp.lt.s32.totalorder %s13, 1
      %s139 = scalar_select %p138, %s13, 1
      %s140 = smul.addr %s139, 8
      %s141 = scalar_lea.vmem %s2, %s140
      %v142 = vld [vmem:[%s137] sm:$0xff]
      %v143 = vld [vmem:[%s137 + $0x8] sm:$0xff]
      %v144 = vld [vmem:[%s1] sm:$0xff]
      %v145 = vld [vmem:[%s1 + $0x8] sm:$0xff]
      %v146 = vld [vmem:[%s1 + $0x10] sm:$0xff]
      %v147 = vld [vmem:[%s1 + $0x18] sm:$0xff]
      %v148 = vld [vmem:[%s1 + $0x20] sm:$0xff]
      %v149 = vld [vmem:[%s1 + $0x28] sm:$0xff]
      %v150 = vld [vmem:[%s1 + $0x30] sm:$0xff]
      %v151 = vld [vmem:[%s1 + $0x38] sm:$0xff]
      %v152 = vld [vmem:[%s1 + $0x40] sm:$0xff]
      %v153 = vld [vmem:[%s1 + $0x48] sm:$0xff]
      %v154 = vld [vmem:[%s1 + $0x50] sm:$0xff]
      %v155 = vld [vmem:[%s1 + $0x58] sm:$0xff]
      %v156 = vld [vmem:[%s1 + $0x60] sm:$0xff]
      %v157 = vld [vmem:[%s1 + $0x68] sm:$0xff]
      %v158 = vld [vmem:[%s1 + $0x70] sm:$0xff]
      %v159 = vld [vmem:[%s1 + $0x78] sm:$0xff]
      %v160 = vld [vmem:[%s1 + $0x80] sm:$0xff]
      %v161 = vld [vmem:[%s1 + $0x88] sm:$0xff]
      %v162 = vld [vmem:[%s1 + $0x90] sm:$0xff]
      %v163 = vld [vmem:[%s1 + $0x98] sm:$0xff]
      %v164 = vld [vmem:[%s1 + $0xa0] sm:$0xff]
      %v165 = vld [vmem:[%s1 + $0xa8] sm:$0xff]
      %v166 = vld [vmem:[%s1 + $0xb0] sm:$0xff]
      %v167 = vld [vmem:[%s1 + $0xb8] sm:$0xff]
      %v168 = vld [vmem:[%s1 + $0xc0] sm:$0xff]
      %v169 = vld [vmem:[%s1 + $0xc8] sm:$0xff]
      %v170 = vld [vmem:[%s1 + $0xd0] sm:$0xff]
      %v171 = vld [vmem:[%s1 + $0xd8] sm:$0xff]
      %v172 = vld [vmem:[%s1 + $0xe0] sm:$0xff]
      %v173 = vld [vmem:[%s1 + $0xe8] sm:$0xff]
      %v174 = vld [vmem:[%s1 + $0xf0] sm:$0xff]
      %v175 = vld [vmem:[%s1 + $0xf8] sm:$0xff]
      %176 = vmatprep.subr.mxu0 0.0
      %177 = vmatpush1.msra.mxu0 %v144
      %178 = vmatprep.subr.mxu0 0.0
      %179 = vmatpush1.msra.mxu0 %v145
      %180 = vmatprep.subr.mxu0 0.0
      %181 = vmatpush1.msra.mxu0 %v146
      %182 = vmatprep.subr.mxu0 0.0
      %183 = vmatpush1.msra.mxu0 %v147
      %184 = vmatprep.subr.mxu0 0.0
      %185 = vmatpush1.msra.mxu0 %v148
      %186 = vmatprep.subr.mxu0 0.0
      %187 = vmatpush1.msra.mxu0 %v149
      %188 = vmatprep.subr.mxu0 0.0
      %189 = vmatpush1.msra.mxu0 %v150
      %190 = vmatprep.subr.mxu0 0.0
      %191 = vmatpush1.msra.mxu0 %v151
      %192 = vmatprep.subr.mxu0 0.0
      %193 = vmatpush1.msra.mxu0 %v152
      %194 = vmatprep.subr.mxu0 0.0
      %195 = vmatpush1.msra.mxu0 %v153
      %196 = vmatprep.subr.mxu0 0.0
      %197 = vmatpush1.msra.mxu0 %v154
      %198 = vmatprep.subr.mxu0 0.0
      %199 = vmatpush1.msra.mxu0 %v155
      %200 = vmatprep.subr.mxu0 0.0
      %201 = vmatpush1.msra.mxu0 %v156
      %202 = vmatprep.subr.mxu0 0.0
      %203 = vmatpush1.msra.mxu0 %v157
      %204 = vmatprep.subr.mxu0 0.0
      %205 = vmatpush1.msra.mxu0 %v158
      %206 = vmatprep.subr.mxu0 0.0
      %207 = vmatpush1.msra.mxu0 %v159
      %208 = vmatprep.subr.mxu0 0.0
      %209 = vmatpush1.msra.mxu0 %v160
      %210 = vmatprep.subr.mxu0 0.0
      %211 = vmatpush1.msra.mxu0 %v161
      %212 = vmatprep.subr.mxu0 0.0
      %213 = vmatpush1.msra.mxu0 %v162
      %214 = vmatprep.subr.mxu0 0.0
      %215 = vmatpush1.msra.mxu0 %v163
      %216 = vmatprep.subr.mxu0 0.0
      %217 = vmatpush1.msra.mxu0 %v164
      %218 = vmatprep.subr.mxu0 0.0
      %219 = vmatpush1.msra.mxu0 %v165
      %220 = vmatprep.subr.mxu0 0.0
      %221 = vmatpush1.msra.mxu0 %v166
      %222 = vmatprep.subr.mxu0 0.0
      %223 = vmatpush1.msra.mxu0 %v167
      %224 = vmatprep.subr.mxu0 0.0
      %225 = vmatpush1.msra.mxu0 %v168
      %226 = vmatprep.subr.mxu0 0.0
      %227 = vmatpush1.msra.mxu0 %v169
      %228 = vmatprep.subr.mxu0 0.0
      %229 = vmatpush1.msra.mxu0 %v170
      %230 = vmatprep.subr.mxu0 0.0
      %231 = vmatpush1.msra.mxu0 %v171
      %232 = vmatprep.subr.mxu0 0.0
      %233 = vmatpush1.msra.mxu0 %v172
      %234 = vmatprep.subr.mxu0 0.0
      %235 = vmatpush1.msra.mxu0 %v173
      %236 = vmatprep.subr.mxu0 0.0
      %237 = vmatpush1.msra.mxu0 %v174
      %238 = vmatprep.subr.mxu0 0.0
      %239 = vmatpush1.msra.mxu0 %v175
      %240 = vmatprep.mubr.f32.mxu0 %v143
      %241 = vmatmul.mubr.f32.gmra.mrb[0].mxu0 %v142
      %v242 = vpop.f32.mrb[0].mxu0
      %v243 = vadd.f32 0.0, %v242
      %v244 = vpop.f32.mrb[0].mxu0
      %245 = vdwg.mxu0
      %vm246 = vcmask 523264
      %247 = vst.msk [vmem:[%s141] sm:$0xff] %vm246, %v243
      %p248 = scmp.lt.s32.totalorder %s13, 1
      %s249 = scalar_select %p248, %s13, 1
      %s250 = smul.addr %s249, 8
      %s251 = scalar_lea.vmem %s2, %s250
      // Predicated region
      $region29: #{unet_level_forward.10} parent=27 // pred_check
        %p252 = pneg %p78
      $region30: #{unet_level_forward.10} parent=27 // pred_check_branch
        %254 = sbr.rel (%p252) target = $region32
      $region31: #{unet_level_forward.10} parent=27 // pred_region
        _
      $region32: #{unet_level_forward.10} parent=27 // pred_fallthru
        _
    $region28: #{unet_level_forward.10} parent=5 // pred_fallthru
      _
    %p255 = scmp.le.s32.totalorder 2, %s8
    // Predicated region
    $region33: #{unet_level_forward.10} parent=5 // pred_check
      %p256 = pneg %p255
    $region34: #{unet_level_forward.10} parent=5 // pred_check_branch
      %258 = sbr.rel (%p256) target = $region36
    $region35: #{unet_level_forward.10} parent=5 // pred_region
      %s259 = ssub.s32 %s8, 2
      // Predicated region
      $region37: #{unet_level_forward.10} parent=35 // pred_check
        %p260 = pneg %p84
      $region38: #{unet_level_forward.10} parent=35 // pred_check_branch
        %262 = sbr.rel (%p260) target = $region40
      $region39: #{unet_level_forward.10} parent=35 // pred_region
        %p263 = scmp.lt.s32.totalorder %s14, 1
        %s264 = scalar_select %p263, %s14, 1
        %s265 = smul.addr %s264, 8
        %s266 = scalar_lea.vmem %s2, %s265
      $region40: #{unet_level_forward.10} parent=35 // pred_fallthru
        _
    $region36: #{unet_level_forward.10} parent=5 // pred_fallthru
      _
  $region6: #{unet_level_forward.10} parent=0 // loop_footer
    %s12 = sadd.s32 1, %s8
  $region7: #{unet_level_forward.10} parent=0 // loop_footer_branch
    %7 = sbr.rel target = $region3
  $region8: #{unet_level_forward.10} parent=0 // loop_exit
    _

// kernel: unet_level_forward.11
$region0: #{unet_level_forward.11}
  #allocation0 [shape = 'u32[]', space=smem, size = 0x4, offset = 0x4, fixed_abs, tag = 'smem constant byte address 0x4 - core index']
  #allocation1 [shape = 'u32[144,128]{1,0:T(1,128)}', space=vmem, size = 0x12000, scoped, tag = 'internal scratch']
  %s0 = inlined_call_operand.vmem [shape: f32[2,72,64], index: 0, kind: input, shape index: {}]
  %s1 = inlined_call_operand.vmem [shape: f32[16,72], index: 1, kind: input, shape index: {}]
  %s2 = inlined_call_operand.vmem [shape: f32[2,16,64], index: 2, kind: output, shape index: {}]
  %s3 = sld [smem:[#allocation0]]
  $region41: #{unet_level_forward.11} parent=0
    _
  %s5 = ssub.s32 1, %s3
  %s6 = scalar_select 0, %s5, %s3
  loop: start=0, step=1, limit=4
  $region2: #{unet_level_forward.11} parent=0 // loop_pre_header
    _
  $region3: #{unet_level_forward.11} parent=0 // loop_header
    %s8 = sphi 0, %s12
    %p9 = scmp.ge.s32.totalorder %s8, 4
    %s18 = sphi 0, %s20
    %s21 = sphi 0, %s18
    %s22 = sphi 0, %s21
    %s38 = sphi 0, %s22
    %s42 = sphi 0, %s42
    %s44 = sphi 0, %s42
    %s45 = sphi 0, %s44
    %s59 = sphi 0, %s45
    %s65 = sphi 0, %s67
    %s68 = sphi 0, %s65
    %s69 = sphi 0, %s68
    %s85 = sphi 0, %s69
  $region4: #{unet_level_forward.11} parent=0 // loop_header_branch
    %11 = sbr.rel (%p9) target = $region8
  $region5: #{unet_level_forward.11} parent=0 // loop_body
    %s13 = ssub.s32 %s8, 1
    %s14 = ssub.s32 %s8, 2
    %s15 = sadd.s32 %s8, 1
    %s16 = ssub.s32 %s8, %s15
    %p17 = scmp.eq.s32.totalorder %s16, 0
    %s19 = sadd.s32 %s18, 1
    %s20 = scalar_select %p17, %s18, %s19
    %p23 = pneg %p17
    %p24 = scmp.eq.s32.totalorder %s8, 1
    %p25 = por %p23, %p24
    %p26 = scmp.ne.s32.totalorder %s18, %s21
    %p27 = scmp.eq.s32.totalorder %s8, 0
    %p28 = por %p26, %p27
    %p29 = scmp.ne.s32.totalorder %s18, %s21
    %p30 = scmp.eq.s32.totalorder %s13, 1
    %p31 = por %p29, %p30
    %p32 = scmp.ne.s32.totalorder %s21, %s22
    %p33 = scmp.eq.s32.totalorder %s13, 0
    %p34 = por %p32, %p33
    %p35 = scmp.ne.s32.totalorder %s21, %s22
    %p36 = scmp.eq.s32.totalorder %s14, 1
    %p37 = por %p35, %p36
    %p39 = scmp.ne.s32.totalorder %s22, %s38
    %p40 = scmp.eq.s32.totalorder %s14, 0
    %p41 = por %p39, %p40
    %s43 = sadd.s32 %s42, 1
    %p46 = scmp.eq.s32.totalorder %s8, 1
    %p47 = scmp.ne.s32.totalorder %s42, %s44
    %p48 = scmp.eq.s32.totalorder %s8, 0
    %p49 = por %p47, %p48
    %p50 = scmp.ne.s32.totalorder %s42, %s44
    %p51 = scmp.eq.s32.totalorder %s13, 1
    %p52 = por %p50, %p51
    %p53 = scmp.ne.s32.totalorder %s44, %s45
    %p54 = scmp.eq.s32.totalorder %s13, 0
    %p55 = por %p53, %p54
    %p56 = scmp.ne.s32.totalorder %s44, %s45
    %p57 = scmp.eq.s32.totalorder %s14, 1
    %p58 = por %p56, %p57
    %p60 = scmp.ne.s32.totalorder %s45, %s59
    %p61 = scmp.eq.s32.totalorder %s14, 0
    %p62 = por %p60, %p61
    %s63 = ssub.s32 %s8, %s15
    %p64 = scmp.eq.s32.totalorder %s63, 0
    %s66 = sadd.s32 %s65, 1
    %s67 = scalar_select %p64, %s65, %s66
    %p70 = pneg %p64
    %p71 = scmp.eq.s32.totalorder %s8, 1
    %p72 = por %p70, %p71
    %p73 = scmp.ne.s32.totalorder %s65, %s68
    %p74 = scmp.eq.s32.totalorder %s8, 0
    %p75 = por %p73, %p74
    %p76 = scmp.ne.s32.totalorder %s65, %s68
    %p77 = scmp.eq.s32.totalorder %s13, 1
    %p78 = por %p76, %p77
    %p79 = scmp.ne.s32.totalorder %s68, %s69
    %p80 = scmp.eq.s32.totalorder %s13, 0
    %p81 = por %p79, %p80
    %p82 = scmp.ne.s32.totalorder %s68, %s69
    %p83 = scmp.eq.s32.totalorder %s14, 1
    %p84 = por %p82, %p83
    %p86 = scmp.ne.s32.totalorder %s69, %s85
    %p87 = scmp.eq.s32.totalorder %s14, 0
    %p88 = por %p86, %p87
    %p89 = scmp.le.s32.totalorder 1, %s8
    %p90 = scmp.lt.s32.totalorder %s8, 3
    %p91 = pnand %p89, %p90
    %p92 = pneg %p91
    // Predicated region
    $region9: #{unet_level_forward.11} parent=5 // pred_check
      _
    $region10: #{unet_level_forward.11} parent=5 // pred_check_branch
      %94 = sbr.rel (%p91) target = $region12
    $region11: #{unet_level_forward.11} parent=5 // pred_region
      %s95 = ssub.s32 %s8, 1
      // Predicated region
      $region13: #{unet_level_forward.11} parent=11 // pred_check
        %p96 = pneg %p55
      $region14: #{unet_level_forward.11} parent=11 // pred_check_branch
        %98 = sbr.rel (%p96) target = $region16
      $region15: #{unet_level_forward.11} parent=11 // pred_region
        _
      $region16: #{unet_level_forward.11} parent=11 // pred_fallthru
        _
    $region12: #{unet_level_forward.11} parent=5 // pred_fallthru
      _
    %p99 = scmp.lt.s32.totalorder %s8, 2
    // Predicated region
    $region17: #{unet_level_forward.11} parent=5 // pred_check
      %p100 = pneg %p99
    $region18: #{unet_level_forward.11} parent=5 // pred_check_branch
      %102 = sbr.rel (%p100) target = $region20
    $region19: #{unet_level_forward.11} parent=5 // pred_region
      // Predicated region
      $region21: #{unet_level_forward.11} parent=19 // pred_check
        %p103 = pneg %p28
      $region22: #{unet_level_forward.11} parent=19 // pred_check_branch
        %105 = sbr.rel (%p103) target = $region24
      $region23: #{unet_level_forward.11} parent=19 // pred_region
        %p106 = scmp.lt.s32.totalorder %s8, 1
        %s107 = scalar_select %p106, %s8, 1
        %s108 = smul.addr %s107, 9
        %s109 = smul.addr %s108, 8
        %s110 = scalar_lea.vmem %s0, %s109
      $region24: #{unet_level_forward.11} parent=19 // pred_fallthru
        _
    $region20: #{unet_level_forward.11} parent=5 // pred_fallthru
      _
    %p111 = scmp.le.s32.totalorder 1, %s8
    %p112 = scmp.lt.s32.totalorder %s8, 3
    %p113 = pnand %p111, %p112
    %p114 = pneg %p113
    // Predicated region
    $region25: #{unet_level_forward.11} parent=5 // pred_check
      _
    $region26: #{unet_level_forward.11} parent=5 // pred_check_branch
      %116 = sbr.rel (%p113) target = $region28
    $region27: #{unet_level_forward.11} parent=5 // pred_region
      %s117 = ssub.s32 %s8, 1
      %p118 = scmp.lt.s32.totalorder %s13, 1
      %s119 = scalar_select %p118, %s13, 1
      %s120 = smul.addr %s119, 9
      %s121 = smul.addr %s120, 8
      %s122 = scalar_lea.vmem %s0, %s121
      %p123 = pneg %p34
      %p124 = pneg %p31
      %p125 = pneg %p55
      %p126 = pneg %p52
      %p127 = pneg %p81
      %p128 = pneg %p78
      %p129 = scmp.lt.s32.totalorder %s13, 1
      %s130 = scalar_select %p129, %s13, 1
      %s131 = smul.addr %s130, 2
      %s132 = smul.addr %s131, 8
      %s133 = scalar_lea.vmem %s2, %s132
      %p134 = scmp.lt.s32.totalorder %s13, 1
      %s135 = scalar_select %p134, %s13, 1
      %s136 = smul.addr %s135, 9
      %s137 = smul.addr %s136, 8
      %s138 = scalar_lea.vmem %s0, %s137
      %p139 = scmp.lt.s32.totalorder %s13, 1
      %s140 = scalar_select %p139, %s13, 1
      %s141 = smul.addr %s140, 2
      %s142 = smul.addr %s141, 8
      %s143 = scalar_lea.vmem %s2, %s142
      %v144 = vld [vmem:[%s138] sm:$0xff]
      %v145 = vld [vmem:[%s138 + $0x8] sm:$0xff]
      %v146 = vld [vmem:[%s138 + $0x10] sm:$0xff]
      %v147 = vld [vmem:[%s138 + $0x18] sm:$0xff]
      %v148 = vld [vmem:[%s138 + $0x20] sm:$0xff]
      %v149 = vld [vmem:[%s138 + $0x28] sm:$0xff]
      %v150 = vld [vmem:[%s138 + $0x30] sm:$0xff]
      %v151 = vld [vmem:[%s138 + $0x38] sm:$0xff]
      %v152 = vld [vmem:[%s138 + $0x40] sm:$0xff]
      %v153 = vld [vmem:[%s1] sm:$0xff]
      %v154 = vld [vmem:[%s1 + $0x8] sm:$0xff]
      %vm155 = vcmask 588800
      %v157 = vsel %vm155, %v153, 0
      %v160 = vsel %vm155, %v154, 0
      %162 = vmatprep.subr.mxu0 0.0
      %163 = vmatpush1.msra.mxu0 %v144
      %164 = vmatprep.subr.mxu0 0.0
      %165 = vmatpush1.msra.mxu0 %v145
      %166 = vmatprep.subr.mxu0 0.0
      %167 = vmatpush1.msra.mxu0 %v146
      %168 = vmatprep.subr.mxu0 0.0
      %169 = vmatpush1.msra.mxu0 %v147
      %170 = vmatprep.subr.mxu0 0.0
      %171 = vmatpush1.msra.mxu0 %v148
      %172 = vmatprep.subr.mxu0 0.0
      %173 = vmatpush1.msra.mxu0 %v149
      %174 = vmatprep.subr.mxu0 0.0
      %175 = vmatpush1.msra.mxu0 %v150
      %176 = vmatprep.subr.mxu0 0.0
      %177 = vmatpush1.msra.mxu0 %v151
      %178 = vmatprep.subr.mxu0 0.0
      %179 = vmatpush1.msra.mxu0 %v152
      %180 = vmatprep.subr.mxu0 0.0
      %181 = vmatpush1.msra.mxu0 0.0
      %182 = vmatprep.subr.mxu0 0.0
      %183 = vmatpush1.msra.mxu0 0.0
      %184 = vmatprep.subr.mxu0 0.0
      %185 = vmatpush1.msra.mxu0 0.0
      %186 = vmatprep.subr.mxu0 0.0
      %187 = vmatpush1.msra.mxu0 0.0
      %188 = vmatprep.subr.mxu0 0.0
      %189 = vmatpush1.msra.mxu0 0.0
      %190 = vmatprep.subr.mxu0 0.0
      %191 = vmatpush1.msra.mxu0 0.0
      %192 = vmatprep.subr.mxu0 0.0
      %193 = vmatpush1.msra.mxu0 0.0
      %194 = vmatprep.subr.mxu0 0.0
      %195 = vmatpush1.msra.mxu0 0.0
      %196 = vmatprep.subr.mxu0 0.0
      %197 = vmatpush1.msra.mxu0 0.0
      %198 = vmatprep.subr.mxu0 0.0
      %199 = vmatpush1.msra.mxu0 0.0
      %200 = vmatprep.subr.mxu0 0.0
      %201 = vmatpush1.msra.mxu0 0.0
      %202 = vmatprep.subr.mxu0 0.0
      %203 = vmatpush1.msra.mxu0 0.0
      %204 = vmatprep.subr.mxu0 0.0
      %205 = vmatpush1.msra.mxu0 0.0
      %206 = vmatprep.subr.mxu0 0.0
      %207 = vmatpush1.msra.mxu0 0.0
      %208 = vmatprep.subr.mxu0 0.0
      %209 = vmatpush1.msra.mxu0 0.0
      %210 = vmatprep.subr.mxu0 0.0
      %211 = vmatpush1.msra.mxu0 0.0
      %212 = vmatprep.subr.mxu0 0.0
      %213 = vmatpush1.msra.mxu0 0.0
      %214 = vmatprep.subr.mxu0 0.0
      %215 = vmatpush1.msra.mxu0 0.0
      %216 = vmatprep.subr.mxu0 0.0
      %217 = vmatpush1.msra.mxu0 0.0
      %218 = vmatprep.subr.mxu0 0.0
      %219 = vmatpush1.msra.mxu0 0.0
      %220 = vmatprep.subr.mxu0 0.0
      %221 = vmatpush1.msra.mxu0 0.0
      %222 = vmatprep.subr.mxu0 0.0
      %223 = vmatpush1.msra.mxu0 0.0
      %224 = vmatprep.subr.mxu0 0.0
      %225 = vmatpush1.msra.mxu0 0.0
      %226 = vmatprep.mubr.f32.mxu0 0.0
      %227 = vmatmul.mubr.f32.gmra.mrb[0].mxu0 %v157
      %v228 = vpop.f32.mrb[0].mxu0
      %v229 = vadd.f32 0.0, %v228
      %v230 = vpop.f32.mrb[0].mxu0
      %231 = vmatprep.mubr.f32.mxu0 0.0
      %232 = vmatmul.mubr.f32.gmra.mrb[0].mxu0 %v160
      %v233 = vpop.f32.mrb[0].mxu0
      %v234 = vadd.f32 0.0, %v233
      %v235 = vpop.f32.mrb[0].mxu0
      %236 = vdwg.mxu0
      %vm237 = vcmask 523264
      %v238 = vsel %vm237, %v229, 0.0
      %239 = vadd.xlane.f32.xlu0 %v238
      %v240 = vpop.xlane.xlu0 %239
      %v241 = vsel %vm237, %v234, 0.0
      %242 = vadd.xlane.f32.xlu0 %v241
      %v243 = vpop.xlane.xlu0 %242
      %v244 = vrcp.pop 64.0
      %v245 = vmul.f32 %v240, %v244
      %v246 = vmul.f32 %v243, %v244
      %v247 = vsub.f32 %v229, %v245
      %v248 = vsub.f32 %v234, %v246
      %v249 = vmul.f32 %v247, %v247
      %v250 = vmul.f32 %v248, %v248
      %v251 = vsel %vm237, %v249, 0.0
      %252 = vadd.xlane.f32.xlu0 %v251
      %v253 = vpop.xlane.xlu0 %252
      %v254 = vsel %vm237, %v250, 0.0
      %255 = vadd.xlane.f32.xlu0 %v254
      %v256 = vpop.xlane.xlu0 %255
      %v257 = vmul.f32 %v253, %v244
      %v258 = vmul.f32 %v256, %v244
      %v259 = vadd.f32 %v257, 1e-05
      %v260 = vadd.f32 %v258, 1e-05
      %v261 = vrsqrt.pop %v259
      %v262 = vmul.f32 %v259, %v261
      %vm263 = vcmp.eq.f32.partialorder %v259, inf
      %v264 = vsel %vm263, %v259, %v262
      %vm265 = vcmp.eq.f32.partialorder %v259, 0.0
      %v266 = vand.u32 %v259, 2147483648
      %v267 = vsel %vm265, %v266, %v264
      %v268 = vrsqrt.pop %v260
      %v269 = vmul.f32 %v260, %v268
      %vm270 = vcmp.eq.f32.partialorder %v260, inf
      %v271 = vsel %vm270, %v260, %v269
      %vm272 = vcmp.eq.f32.partialorder %v260, 0.0
      %v273 = vand.u32 %v260, 2147483648
      %v274 = vsel %vm272, %v273, %v271
      %v275 = vrcp.pop %v267
      %v276 = vmul.f32 %v247, %v275
      %v277 = vrcp.pop %v274
      %v278 = vmul.f32 %v248, %v277
      %vm279 = vcmp.ge.f32.partialorder %v276, 0.0
      %vm280 = vcmp.ge.f32.partialorder %v278, 0.0
      %v281 = vmul.f32 %v276, 0.2
      %v282 = vmul.f32 %v278, 0.2
      %v283 = vsel %vm279, %v276, %v281
      %v284 = vsel %vm280, %v278, %v282
      %285 = vst.msk [vmem:[%s143] sm:$0xff] %vm237, %v283
      %286 = vst.msk [vmem:[%s143 + $0x8] sm:$0xff] %vm237, %v284
      %p287 = scmp.lt.s32.totalorder %s13, 1
      %s288 = scalar_select %p287, %s13, 1
      %s289 = smul.addr %s288, 2
      %s290 = smul.addr %s289, 8
      %s291 = scalar_lea.vmem %s2, %s290
      // Predicated region
      $region29: #{unet_level_forward.11} parent=27 // pred_check
        %p292 = pneg %p78
      $region30: #{unet_level_forward.11} parent=27 // pred_check_branch
        %294 = sbr.rel (%p292) target = $region32
      $region31: #{unet_level_forward.11} parent=27 // pred_region
        _
      $region32: #{unet_level_forward.11} parent=27 // pred_fallthru
        _
    $region28: #{unet_level_forward.11} parent=5 // pred_fallthru
      _
    %p295 = scmp.le.s32.totalorder 2, %s8
    // Predicated region
    $region33: #{unet_level_forward.11} parent=5 // pred_check
      %p296 = pneg %p295
    $region34: #{unet_level_forward.11} parent=5 // pred_check_branch
      %298 = sbr.rel (%p296) target = $region36
    $region35: #{unet_level_forward.11} parent=5 // pred_region
      %s299 = ssub.s32 %s8, 2
      // Predicated region
      $region37: #{unet_level_forward.11} parent=35 // pred_check
        %p300 = pneg %p84
      $region38: #{unet_level_forward.11} parent=35 // pred_check_branch
        %302 = sbr.rel (%p300) target = $region40
      $region39: #{unet_level_forward.11} parent=35 // pred_region
        %p303 = scmp.lt.s32.totalorder %s14, 1
        %s304 = scalar_select %p303, %s14, 1
        %s305 = smul.addr %s304, 2
        %s306 = smul.addr %s305, 8
        %s307 = scalar_lea.vmem %s2, %s306
      $region40: #{unet_level_forward.11} parent=35 // pred_fallthru
        _
    $region36: #{unet_level_forward.11} parent=5 // pred_fallthru
      _
  $region6: #{unet_level_forward.11} parent=0 // loop_footer
    %s12 = sadd.s32 1, %s8
  $region7: #{unet_level_forward.11} parent=0 // loop_footer_branch
    %7 = sbr.rel target = $region3
  $region8: #{unet_level_forward.11} parent=0 // loop_exit
    _

// kernel: unet_level_forward.12
$region0: #{unet_level_forward.12}
  #allocation0 [shape = 'u32[]', space=smem, size = 0x4, offset = 0x4, fixed_abs, tag = 'smem constant byte address 0x4 - core index']
  #allocation1 [shape = 'u32[144,128]{1,0:T(1,128)}', space=vmem, size = 0x12000, scoped, tag = 'internal scratch']
  %s0 = inlined_call_operand.vmem [shape: f32[2,144,64], index: 0, kind: input, shape index: {}]
  %s1 = inlined_call_operand.vmem [shape: f32[16,144], index: 1, kind: input, shape index: {}]
  %s2 = inlined_call_operand.vmem [shape: f32[2,16,64], index: 2, kind: output, shape index: {}]
  %s3 = sld [smem:[#allocation0]]
  $region41: #{unet_level_forward.12} parent=0
    _
  %s5 = ssub.s32 1, %s3
  %s6 = scalar_select 0, %s5, %s3
  loop: start=0, step=1, limit=4
  $region2: #{unet_level_forward.12} parent=0 // loop_pre_header
    _
  $region3: #{unet_level_forward.12} parent=0 // loop_header
    %s8 = sphi 0, %s12
    %p9 = scmp.ge.s32.totalorder %s8, 4
    %s18 = sphi 0, %s20
    %s21 = sphi 0, %s18
    %s22 = sphi 0, %s21
    %s38 = sphi 0, %s22
    %s42 = sphi 0, %s42
    %s44 = sphi 0, %s42
    %s45 = sphi 0, %s44
    %s59 = sphi 0, %s45
    %s65 = sphi 0, %s67
    %s68 = sphi 0, %s65
    %s69 = sphi 0, %s68
    %s85 = sphi 0, %s69
  $region4: #{unet_level_forward.12} parent=0 // loop_header_branch
    %11 = sbr.rel (%p9) target = $region8
  $region5: #{unet_level_forward.12} parent=0 // loop_body
    %s13 = ssub.s32 %s8, 1
    %s14 = ssub.s32 %s8, 2
    %s15 = sadd.s32 %s8, 1
    %s16 = ssub.s32 %s8, %s15
    %p17 = scmp.eq.s32.totalorder %s16, 0
    %s19 = sadd.s32 %s18, 1
    %s20 = scalar_select %p17, %s18, %s19
    %p23 = pneg %p17
    %p24 = scmp.eq.s32.totalorder %s8, 1
    %p25 = por %p23, %p24
    %p26 = scmp.ne.s32.totalorder %s18, %s21
    %p27 = scmp.eq.s32.totalorder %s8, 0
    %p28 = por %p26, %p27
    %p29 = scmp.ne.s32.totalorder %s18, %s21
    %p30 = scmp.eq.s32.totalorder %s13, 1
    %p31 = por %p29, %p30
    %p32 = scmp.ne.s32.totalorder %s21, %s22
    %p33 = scmp.eq.s32.totalorder %s13, 0
    %p34 = por %p32, %p33
    %p35 = scmp.ne.s32.totalorder %s21, %s22
    %p36 = scmp.eq.s32.totalorder %s14, 1
    %p37 = por %p35, %p36
    %p39 = scmp.ne.s32.totalorder %s22, %s38
    %p40 = scmp.eq.s32.totalorder %s14, 0
    %p41 = por %p39, %p40
    %s43 = sadd.s32 %s42, 1
    %p46 = scmp.eq.s32.totalorder %s8, 1
    %p47 = scmp.ne.s32.totalorder %s42, %s44
    %p48 = scmp.eq.s32.totalorder %s8, 0
    %p49 = por %p47, %p48
    %p50 = scmp.ne.s32.totalorder %s42, %s44
    %p51 = scmp.eq.s32.totalorder %s13, 1
    %p52 = por %p50, %p51
    %p53 = scmp.ne.s32.totalorder %s44, %s45
    %p54 = scmp.eq.s32.totalorder %s13, 0
    %p55 = por %p53, %p54
    %p56 = scmp.ne.s32.totalorder %s44, %s45
    %p57 = scmp.eq.s32.totalorder %s14, 1
    %p58 = por %p56, %p57
    %p60 = scmp.ne.s32.totalorder %s45, %s59
    %p61 = scmp.eq.s32.totalorder %s14, 0
    %p62 = por %p60, %p61
    %s63 = ssub.s32 %s8, %s15
    %p64 = scmp.eq.s32.totalorder %s63, 0
    %s66 = sadd.s32 %s65, 1
    %s67 = scalar_select %p64, %s65, %s66
    %p70 = pneg %p64
    %p71 = scmp.eq.s32.totalorder %s8, 1
    %p72 = por %p70, %p71
    %p73 = scmp.ne.s32.totalorder %s65, %s68
    %p74 = scmp.eq.s32.totalorder %s8, 0
    %p75 = por %p73, %p74
    %p76 = scmp.ne.s32.totalorder %s65, %s68
    %p77 = scmp.eq.s32.totalorder %s13, 1
    %p78 = por %p76, %p77
    %p79 = scmp.ne.s32.totalorder %s68, %s69
    %p80 = scmp.eq.s32.totalorder %s13, 0
    %p81 = por %p79, %p80
    %p82 = scmp.ne.s32.totalorder %s68, %s69
    %p83 = scmp.eq.s32.totalorder %s14, 1
    %p84 = por %p82, %p83
    %p86 = scmp.ne.s32.totalorder %s69, %s85
    %p87 = scmp.eq.s32.totalorder %s14, 0
    %p88 = por %p86, %p87
    %p89 = scmp.le.s32.totalorder 1, %s8
    %p90 = scmp.lt.s32.totalorder %s8, 3
    %p91 = pnand %p89, %p90
    %p92 = pneg %p91
    // Predicated region
    $region9: #{unet_level_forward.12} parent=5 // pred_check
      _
    $region10: #{unet_level_forward.12} parent=5 // pred_check_branch
      %94 = sbr.rel (%p91) target = $region12
    $region11: #{unet_level_forward.12} parent=5 // pred_region
      %s95 = ssub.s32 %s8, 1
      // Predicated region
      $region13: #{unet_level_forward.12} parent=11 // pred_check
        %p96 = pneg %p55
      $region14: #{unet_level_forward.12} parent=11 // pred_check_branch
        %98 = sbr.rel (%p96) target = $region16
      $region15: #{unet_level_forward.12} parent=11 // pred_region
        _
      $region16: #{unet_level_forward.12} parent=11 // pred_fallthru
        _
    $region12: #{unet_level_forward.12} parent=5 // pred_fallthru
      _
    %p99 = scmp.lt.s32.totalorder %s8, 2
    // Predicated region
    $region17: #{unet_level_forward.12} parent=5 // pred_check
      %p100 = pneg %p99
    $region18: #{unet_level_forward.12} parent=5 // pred_check_branch
      %102 = sbr.rel (%p100) target = $region20
    $region19: #{unet_level_forward.12} parent=5 // pred_region
      // Predicated region
      $region21: #{unet_level_forward.12} parent=19 // pred_check
        %p103 = pneg %p28
      $region22: #{unet_level_forward.12} parent=19 // pred_check_branch
        %105 = sbr.rel (%p103) target = $region24
      $region23: #{unet_level_forward.12} parent=19 // pred_region
        %p106 = scmp.lt.s32.totalorder %s8, 1
        %s107 = scalar_select %p106, %s8, 1
        %s108 = smul.addr %s107, 18
        %s109 = smul.addr %s108, 8
        %s110 = scalar_lea.vmem %s0, %s109
      $region24: #{unet_level_forward.12} parent=19 // pred_fallthru
        _
    $region20: #{unet_level_forward.12} parent=5 // pred_fallthru
      _
    %p111 = scmp.le.s32.totalorder 1, %s8
    %p112 = scmp.lt.s32.totalorder %s8, 3
    %p113 = pnand %p111, %p112
    %p114 = pneg %p113
    // Predicated region
    $region25: #{unet_level_forward.12} parent=5 // pred_check
      _
    $region26: #{unet_level_forward.12} parent=5 // pred_check_branch
      %116 = sbr.rel (%p113) target = $region28
    $region27: #{unet_level_forward.12} parent=5 // pred_region
      %s117 = ssub.s32 %s8, 1
      %p118 = scmp.lt.s32.totalorder %s13, 1
      %s119 = scalar_select %p118, %s13, 1
      %s120 = smul.addr %s119, 18
      %s121 = smul.addr %s120, 8
      %s122 = scalar_lea.vmem %s0, %s121
      %p123 = pneg %p34
      %p124 = pneg %p31
      %p125 = pneg %p55
      %p126 = pneg %p52
      %p127 = pneg %p81
      %p128 = pneg %p78
      %p129 = scmp.lt.s32.totalorder %s13, 1
      %s130 = scalar_select %p129, %s13, 1
      %s131 = smul.addr %s130, 2
      %s132 = smul.addr %s131, 8
      %s133 = scalar_lea.vmem %s2, %s132
      %p134 = scmp.lt.s32.totalorder %s13, 1
      %s135 = scalar_select %p134, %s13, 1
      %s136 = smul.addr %s135, 18
      %s137 = smul.addr %s136, 8
      %s138 = scalar_lea.vmem %s0, %s137
      %p139 = scmp.lt.s32.totalorder %s13, 1
      %s140 = scalar_select %p139, %s13, 1
      %s141 = smul.addr %s140, 2
      %s142 = smul.addr %s141, 8
      %s143 = scalar_lea.vmem %s2, %s142
      %v144 = vld [vmem:[%s138] sm:$0xff]
      %v145 = vld [vmem:[%s138 + $0x8] sm:$0xff]
      %v146 = vld [vmem:[%s138 + $0x10] sm:$0xff]
      %v147 = vld [vmem:[%s138 + $0x18] sm:$0xff]
      %v148 = vld [vmem:[%s138 + $0x20] sm:$0xff]
      %v149 = vld [vmem:[%s138 + $0x28] sm:$0xff]
      %v150 = vld [vmem:[%s138 + $0x30] sm:$0xff]
      %v151 = vld [vmem:[%s138 + $0x38] sm:$0xff]
      %v152 = vld [vmem:[%s138 + $0x40] sm:$0xff]
      %v153 = vld [vmem:[%s138 + $0x48] sm:$0xff]
      %v154 = vld [vmem:[%s138 + $0x50] sm:$0xff]
      %v155 = vld [vmem:[%s138 + $0x58] sm:$0xff]
      %v156 = vld [vmem:[%s138 + $0x60] sm:$0xff]
      %v157 = vld [vmem:[%s138 + $0x68] sm:$0xff]
      %v158 = vld [vmem:[%s138 + $0x70] sm:$0xff]
      %v159 = vld [vmem:[%s138 + $0x78] sm:$0xff]
      %v160 = vld [vmem:[%s138 + $0x80] sm:$0xff]
      %v161 = vld [vmem:[%s138 + $0x88] sm:$0xff]
      %v162 = vld [vmem:[%s1] sm:$0xff]
      %v163 = vld [vmem:[%s1 + $0x8] sm:$0xff]
      %v164 = vld [vmem:[%s1 + $0x10] sm:$0xff]
      %v165 = vld [vmem:[%s1 + $0x18] sm:$0xff]
      %vm166 = vcmask 130048
      %v168 = vsel %vm166, %v163, 0
      %v171 = vsel %vm166, %v165, 0
      %173 = vmatprep.subr.mxu0 0.0
      %174 = vmatpush1.msra.mxu0 %v144
      %175 = vmatprep.subr.mxu0 0.0
      %176 = vmatpush1.msra.mxu0 %v145
      %177 = vmatprep.subr.mxu0 0.0
      %178 = vmatpush1.msra.mxu0 %v146
      %179 = vmatprep.subr.mxu0 0.0
      %180 = vmatpush1.msra.mxu0 %v147
      %181 = vmatprep.subr.mxu0 0.0
      %182 = vmatpush1.msra.mxu0 %v148
      %183 = vmatprep.subr.mxu0 0.0
      %184 = vmatpush1.msra.mxu0 %v149
      %185 = vmatprep.subr.mxu0 0.0
      %186 = vmatpush1.msra.mxu0 %v150
      %187 = vmatprep.subr.mxu0 0.0
      %188 = vmatpush1.msra.mxu0 %v151
      %189 = vmatprep.subr.mxu0 0.0
      %190 = vmatpush1.msra.mxu0 %v152
      %191 = vmatprep.subr.mxu0 0.0
      %192 = vmatpush1.msra.mxu0 %v153
      %193 = vmatprep.subr.mxu0 0.0
      %194 = vmatpush1.msra.mxu0 %v154
      %195 = vmatprep.subr.mxu0 0.0
      %196 = vmatpush1.msra.mxu0 %v155
      %197 = vmatprep.subr.mxu0 0.0
      %198 = vmatpush1.msra.mxu0 %v156
      %199 = vmatprep.subr.mxu0 0.0
      %200 = vmatpush1.msra.mxu0 %v157
      %201 = vmatprep.subr.mxu0 0.0
      %202 = vmatpush1.msra.mxu0 %v158
      %203 = vmatprep.subr.mxu0 0.0
      %204 = vmatpush1.msra.mxu0 %v159
      %205 = vmatprep.subr.mxu0 0.0
      %206 = vmatpush1.msra.mxu0 %v160
      %207 = vmatprep.subr.mxu0 0.0
      %208 = vmatpush1.msra.mxu0 %v161
      %209 = vmatprep.subr.mxu0 0.0
      %210 = vmatpush1.msra.mxu0 0.0
      %211 = vmatprep.subr.mxu0 0.0
      %212 = vmatpush1.msra.mxu0 0.0
      %213 = vmatprep.subr.mxu0 0.0
      %214 = vmatpush1.msra.mxu0 0.0
      %215 = vmatprep.subr.mxu0 0.0
      %216 = vmatpush1.msra.mxu0 0.0
      %217 = vmatprep.subr.mxu0 0.0
      %218 = vmatpush1.msra.mxu0 0.0
      %219 = vmatprep.subr.mxu0 0.0
      %220 = vmatpush1.msra.mxu0 0.0
      %221 = vmatprep.subr.mxu0 0.0
      %222 = vmatpush1.msra.mxu0 0.0
      %223 = vmatprep.subr.mxu0 0.0
      %224 = vmatpush1.msra.mxu0 0.0
      %225 = vmatprep.subr.mxu0 0.0
      %226 = vmatpush1.msra.mxu0 0.0
      %227 = vmatprep.subr.mxu0 0.0
      %228 = vmatpush1.msra.mxu0 0.0
      %229 = vmatprep.subr.mxu0 0.0
      %230 = vmatpush1.msra.mxu0 0.0
      %231 = vmatprep.subr.mxu0 0.0
      %232 = vmatpush1.msra.mxu0 0.0
      %233 = vmatprep.subr.mxu0 0.0
      %234 = vmatpush1.msra.mxu0 0.0
      %235 = vmatprep.subr.mxu0 0.0
      %236 = vmatpush1.msra.mxu0 0.0
      %237 = vmatprep.mubr.f32.mxu0 %v168
      %238 = vmatmul.mubr.f32.gmra.mrb[0].mxu0 %v162
      %v239 = vpop.f32.mrb[0].mxu0
      %v240 = vadd.f32 0.0, %v239
      %v241 = vpop.f32.mrb[0].mxu0
      %242 = vmatprep.mubr.f32.mxu0 %v171
      %243 = vmatmul.mubr.f32.gmra.mrb[0].mxu0 %v164
      %v244 = vpop.f32.mrb[0].mxu0
      %v245 = vadd.f32 0.0, %v244
      %v246 = vpop.f32.mrb[0].mxu0
      %247 = vdwg.mxu0
      %vm248 = vcmask 523264
      %v249 = vsel %vm248, %v240, 0.0
      %250 = vadd.xlane.f32.xlu0 %v249
      %v251 = vpop.xlane.xlu0 %250
      %v252 = vsel %vm248, %v245, 0.0
      %253 = vadd.xlane.f32.xlu0 %v252
      %v254 = vpop.xlane.xlu0 %253
      %v255 = vrcp.pop 64.0
      %v256 = vmul.f32 %v251, %v255
      %v257 = vmul.f32 %v254, %v255
      %v258 = vsub.f32 %v240, %v256
      %v259 = vsub.f32 %v245, %v257
      %v260 = vmul.f32 %v258, %v258
      %v261 = vmul.f32 %v259, %v259
      %v262 = vsel %vm248, %v260, 0.0
      %263 = vadd.xlane.f32.xlu0 %v262
      %v264 = vpop.xlane.xlu0 %263
      %v265 = vsel %vm248, %v261, 0.0
      %266 = vadd.xlane.f32.xlu0 %v265
      %v267 = vpop.xlane.xlu0 %266
      %v268 = vmul.f32 %v264, %v255
      %v269 = vmul.f32 %v267, %v255
      %v270 = vadd.f32 %v268, 1e-05
      %v271 = vadd.f32 %v269, 1e-05
      %v272 = vrsqrt.pop %v270
      %v273 = vmul.f32 %v270, %v272
      %vm274 = vcmp.eq.f32.partialorder %v270, inf
      %v275 = vsel %vm274, %v270, %v273
      %vm276 = vcmp.eq.f32.partialorder %v270, 0.0
      %v277 = vand.u32 %v270, 2147483648
      %v278 = vsel %vm276, %v277, %v275
      %v279 = vrsqrt.pop %v271
      %v280 = vmul.f32 %v271, %v279
      %vm281 = vcmp.eq.f32.partialorder %v271, inf
      %v282 = vsel %vm281, %v271, %v280
      %vm283 = vcmp.eq.f32.partialorder %v271, 0.0
      %v284 = vand.u32 %v271, 2147483648
      %v285 = vsel %vm283, %v284, %v282
      %v286 = vrcp.pop %v278
      %v287 = vmul.f32 %v258, %v286
      %v288 = vrcp.pop %v285
      %v289 = vmul.f32 %v259, %v288
      %vm290 = vcmp.ge.f32.partialorder %v287, 0.0
      %vm291 = vcmp.ge.f32.partialorder %v289, 0.0
      %v292 = vmul.f32 %v287, 0.2
      %v293 = vmul.f32 %v289, 0.2
      %v294 = vsel %vm290, %v287, %v292
      %v295 = vsel %vm291, %v289, %v293
      %296 = vst.msk [vmem:[%s143] sm:$0xff] %vm248, %v294
      %297 = vst.msk [vmem:[%s143 + $0x8] sm:$0xff] %vm248, %v295
      %p298 = scmp.lt.s32.totalorder %s13, 1
      %s299 = scalar_select %p298, %s13, 1
      %s300 = smul.addr %s299, 2
      %s301 = smul.addr %s300, 8
      %s302 = scalar_lea.vmem %s2, %s301
      // Predicated region
      $region29: #{unet_level_forward.12} parent=27 // pred_check
        %p303 = pneg %p78
      $region30: #{unet_level_forward.12} parent=27 // pred_check_branch
        %305 = sbr.rel (%p303) target = $region32
      $region31: #{unet_level_forward.12} parent=27 // pred_region
        _
      $region32: #{unet_level_forward.12} parent=27 // pred_fallthru
        _
    $region28: #{unet_level_forward.12} parent=5 // pred_fallthru
      _
    %p306 = scmp.le.s32.totalorder 2, %s8
    // Predicated region
    $region33: #{unet_level_forward.12} parent=5 // pred_check
      %p307 = pneg %p306
    $region34: #{unet_level_forward.12} parent=5 // pred_check_branch
      %309 = sbr.rel (%p307) target = $region36
    $region35: #{unet_level_forward.12} parent=5 // pred_region
      %s310 = ssub.s32 %s8, 2
      // Predicated region
      $region37: #{unet_level_forward.12} parent=35 // pred_check
        %p311 = pneg %p84
      $region38: #{unet_level_forward.12} parent=35 // pred_check_branch
        %313 = sbr.rel (%p311) target = $region40
      $region39: #{unet_level_forward.12} parent=35 // pred_region
        %p314 = scmp.lt.s32.totalorder %s14, 1
        %s315 = scalar_select %p314, %s14, 1
        %s316 = smul.addr %s315, 2
        %s317 = smul.addr %s316, 8
        %s318 = scalar_lea.vmem %s2, %s317
      $region40: #{unet_level_forward.12} parent=35 // pred_fallthru
        _
    $region36: #{unet_level_forward.12} parent=5 // pred_fallthru
      _
  $region6: #{unet_level_forward.12} parent=0 // loop_footer
    %s12 = sadd.s32 1, %s8
  $region7: #{unet_level_forward.12} parent=0 // loop_footer_branch
    %7 = sbr.rel target = $region3
  $region8: #{unet_level_forward.12} parent=0 // loop_exit
    _

// kernel: unet_level_forward.13
$region0: #{unet_level_forward.13}
  #allocation0 [shape = 'u32[]', space=smem, size = 0x4, offset = 0x4, fixed_abs, tag = 'smem constant byte address 0x4 - core index']
  #allocation1 [shape = 'u32[144,128]{1,0:T(1,128)}', space=vmem, size = 0x12000, scoped, tag = 'internal scratch']
  %s0 = inlined_call_operand.vmem [shape: f32[2,64,256], index: 0, kind: input, shape index: {}]
  %s1 = inlined_call_operand.vmem [shape: f32[8,64], index: 1, kind: input, shape index: {}]
  %s2 = inlined_call_operand.vmem [shape: f32[2,8,256], index: 2, kind: output, shape index: {}]
  %s3 = sld [smem:[#allocation0]]
  $region41: #{unet_level_forward.13} parent=0
    _
  %s5 = ssub.s32 1, %s3
  %s6 = scalar_select 0, %s5, %s3
  loop: start=0, step=1, limit=4
  $region2: #{unet_level_forward.13} parent=0 // loop_pre_header
    _
  $region3: #{unet_level_forward.13} parent=0 // loop_header
    %s8 = sphi 0, %s12
    %p9 = scmp.ge.s32.totalorder %s8, 4
    %s18 = sphi 0, %s20
    %s21 = sphi 0, %s18
    %s22 = sphi 0, %s21
    %s38 = sphi 0, %s22
    %s42 = sphi 0, %s42
    %s44 = sphi 0, %s42
    %s45 = sphi 0, %s44
    %s59 = sphi 0, %s45
    %s65 = sphi 0, %s67
    %s68 = sphi 0, %s65
    %s69 = sphi 0, %s68
    %s85 = sphi 0, %s69
  $region4: #{unet_level_forward.13} parent=0 // loop_header_branch
    %11 = sbr.rel (%p9) target = $region8
  $region5: #{unet_level_forward.13} parent=0 // loop_body
    %s13 = ssub.s32 %s8, 1
    %s14 = ssub.s32 %s8, 2
    %s15 = sadd.s32 %s8, 1
    %s16 = ssub.s32 %s8, %s15
    %p17 = scmp.eq.s32.totalorder %s16, 0
    %s19 = sadd.s32 %s18, 1
    %s20 = scalar_select %p17, %s18, %s19
    %p23 = pneg %p17
    %p24 = scmp.eq.s32.totalorder %s8, 1
    %p25 = por %p23, %p24
    %p26 = scmp.ne.s32.totalorder %s18, %s21
    %p27 = scmp.eq.s32.totalorder %s8, 0
    %p28 = por %p26, %p27
    %p29 = scmp.ne.s32.totalorder %s18, %s21
    %p30 = scmp.eq.s32.totalorder %s13, 1
    %p31 = por %p29, %p30
    %p32 = scmp.ne.s32.totalorder %s21, %s22
    %p33 = scmp.eq.s32.totalorder %s13, 0
    %p34 = por %p32, %p33
    %p35 = scmp.ne.s32.totalorder %s21, %s22
    %p36 = scmp.eq.s32.totalorder %s14, 1
    %p37 = por %p35, %p36
    %p39 = scmp.ne.s32.totalorder %s22, %s38
    %p40 = scmp.eq.s32.totalorder %s14, 0
    %p41 = por %p39, %p40
    %s43 = sadd.s32 %s42, 1
    %p46 = scmp.eq.s32.totalorder %s8, 1
    %p47 = scmp.ne.s32.totalorder %s42, %s44
    %p48 = scmp.eq.s32.totalorder %s8, 0
    %p49 = por %p47, %p48
    %p50 = scmp.ne.s32.totalorder %s42, %s44
    %p51 = scmp.eq.s32.totalorder %s13, 1
    %p52 = por %p50, %p51
    %p53 = scmp.ne.s32.totalorder %s44, %s45
    %p54 = scmp.eq.s32.totalorder %s13, 0
    %p55 = por %p53, %p54
    %p56 = scmp.ne.s32.totalorder %s44, %s45
    %p57 = scmp.eq.s32.totalorder %s14, 1
    %p58 = por %p56, %p57
    %p60 = scmp.ne.s32.totalorder %s45, %s59
    %p61 = scmp.eq.s32.totalorder %s14, 0
    %p62 = por %p60, %p61
    %s63 = ssub.s32 %s8, %s15
    %p64 = scmp.eq.s32.totalorder %s63, 0
    %s66 = sadd.s32 %s65, 1
    %s67 = scalar_select %p64, %s65, %s66
    %p70 = pneg %p64
    %p71 = scmp.eq.s32.totalorder %s8, 1
    %p72 = por %p70, %p71
    %p73 = scmp.ne.s32.totalorder %s65, %s68
    %p74 = scmp.eq.s32.totalorder %s8, 0
    %p75 = por %p73, %p74
    %p76 = scmp.ne.s32.totalorder %s65, %s68
    %p77 = scmp.eq.s32.totalorder %s13, 1
    %p78 = por %p76, %p77
    %p79 = scmp.ne.s32.totalorder %s68, %s69
    %p80 = scmp.eq.s32.totalorder %s13, 0
    %p81 = por %p79, %p80
    %p82 = scmp.ne.s32.totalorder %s68, %s69
    %p83 = scmp.eq.s32.totalorder %s14, 1
    %p84 = por %p82, %p83
    %p86 = scmp.ne.s32.totalorder %s69, %s85
    %p87 = scmp.eq.s32.totalorder %s14, 0
    %p88 = por %p86, %p87
    %p89 = scmp.le.s32.totalorder 1, %s8
    %p90 = scmp.lt.s32.totalorder %s8, 3
    %p91 = pnand %p89, %p90
    %p92 = pneg %p91
    // Predicated region
    $region9: #{unet_level_forward.13} parent=5 // pred_check
      _
    $region10: #{unet_level_forward.13} parent=5 // pred_check_branch
      %94 = sbr.rel (%p91) target = $region12
    $region11: #{unet_level_forward.13} parent=5 // pred_region
      %s95 = ssub.s32 %s8, 1
      // Predicated region
      $region13: #{unet_level_forward.13} parent=11 // pred_check
        %p96 = pneg %p55
      $region14: #{unet_level_forward.13} parent=11 // pred_check_branch
        %98 = sbr.rel (%p96) target = $region16
      $region15: #{unet_level_forward.13} parent=11 // pred_region
        _
      $region16: #{unet_level_forward.13} parent=11 // pred_fallthru
        _
    $region12: #{unet_level_forward.13} parent=5 // pred_fallthru
      _
    %p99 = scmp.lt.s32.totalorder %s8, 2
    // Predicated region
    $region17: #{unet_level_forward.13} parent=5 // pred_check
      %p100 = pneg %p99
    $region18: #{unet_level_forward.13} parent=5 // pred_check_branch
      %102 = sbr.rel (%p100) target = $region20
    $region19: #{unet_level_forward.13} parent=5 // pred_region
      // Predicated region
      $region21: #{unet_level_forward.13} parent=19 // pred_check
        %p103 = pneg %p28
      $region22: #{unet_level_forward.13} parent=19 // pred_check_branch
        %105 = sbr.rel (%p103) target = $region24
      $region23: #{unet_level_forward.13} parent=19 // pred_region
        %p106 = scmp.lt.s32.totalorder %s8, 1
        %s107 = scalar_select %p106, %s8, 1
        %s108 = smul.addr %s107, 16
        %s109 = smul.addr %s108, 8
        %s110 = scalar_lea.vmem %s0, %s109
      $region24: #{unet_level_forward.13} parent=19 // pred_fallthru
        _
    $region20: #{unet_level_forward.13} parent=5 // pred_fallthru
      _
    %p111 = scmp.le.s32.totalorder 1, %s8
    %p112 = scmp.lt.s32.totalorder %s8, 3
    %p113 = pnand %p111, %p112
    %p114 = pneg %p113
    // Predicated region
    $region25: #{unet_level_forward.13} parent=5 // pred_check
      _
    $region26: #{unet_level_forward.13} parent=5 // pred_check_branch
      %116 = sbr.rel (%p113) target = $region28
    $region27: #{unet_level_forward.13} parent=5 // pred_region
      %s117 = ssub.s32 %s8, 1
      %p118 = scmp.lt.s32.totalorder %s13, 1
      %s119 = scalar_select %p118, %s13, 1
      %s120 = smul.addr %s119, 16
      %s121 = smul.addr %s120, 8
      %s122 = scalar_lea.vmem %s0, %s121
      %p123 = pneg %p34
      %p124 = pneg %p31
      %p125 = pneg %p55
      %p126 = pneg %p52
      %p127 = pneg %p81
      %p128 = pneg %p78
      %p129 = scmp.lt.s32.totalorder %s13, 1
      %s130 = scalar_select %p129, %s13, 1
      %s131 = smul.addr %s130, 2
      %s132 = smul.addr %s131, 8
      %s133 = scalar_lea.vmem %s2, %s132
      %p134 = scmp.lt.s32.totalorder %s13, 1
      %s135 = scalar_select %p134, %s13, 1
      %s136 = smul.addr %s135, 16
      %s137 = smul.addr %s136, 8
      %s138 = scalar_lea.vmem %s0, %s137
      %p139 = scmp.lt.s32.totalorder %s13, 1
      %s140 = scalar_select %p139, %s13, 1
      %s141 = smul.addr %s140, 2
      %s142 = smul.addr %s141, 8
      %s143 = scalar_lea.vmem %s2, %s142
      %v144 = vld [vmem:[%s138] sm:$0xff]
      %v145 = vld [vmem:[%s138 + $0x8] sm:$0xff]
      %v146 = vld [vmem:[%s138 + $0x10] sm:$0xff]
      %v147 = vld [vmem:[%s138 + $0x18] sm:$0xff]
      %v148 = vld [vmem:[%s138 + $0x20] sm:$0xff]
      %v149 = vld [vmem:[%s138 + $0x28] sm:$0xff]
      %v150 = vld [vmem:[%s138 + $0x30] sm:$0xff]
      %v151 = vld [vmem:[%s138 + $0x38] sm:$0xff]
      %v152 = vld [vmem:[%s138 + $0x40] sm:$0xff]
      %v153 = vld [vmem:[%s138 + $0x48] sm:$0xff]
      %v154 = vld [vmem:[%s138 + $0x50] sm:$0xff]
      %v155 = vld [vmem:[%s138 + $0x58] sm:$0xff]
      %v156 = vld [vmem:[%s138 + $0x60] sm:$0xff]
      %v157 = vld [vmem:[%s138 + $0x68] sm:$0xff]
      %v158 = vld [vmem:[%s138 + $0x70] sm:$0xff]
      %v159 = vld [vmem:[%s138 + $0x78] sm:$0xff]
      %v160 = vld [vmem:[%s1] sm:$0xff]
      %vm161 = vcmask 523264
      %v163 = vsel %vm161, %v160, 0
      %165 = vmatprep.subr.mxu0 %v145
      %166 = vmatpush1.msra.mxu0 %v144
      %167 = vmatprep.subr.mxu0 %v147
      %168 = vmatpush1.msra.mxu0 %v146
      %169 = vmatprep.subr.mxu0 %v149
      %170 = vmatpush1.msra.mxu0 %v148
      %171 = vmatprep.subr.mxu0 %v151
      %172 = vmatpush1.msra.mxu0 %v150
      %173 = vmatprep.subr.mxu0 %v153
      %174 = vmatpush1.msra.mxu0 %v152
      %175 = vmatprep.subr.mxu0 %v155
      %176 = vmatpush1.msra.mxu0 %v154
      %177 = vmatprep.subr.mxu0 %v157
      %178 = vmatpush1.msra.mxu0 %v156
      %179 = vmatprep.subr.mxu0 %v159
      %180 = vmatpush1.msra.mxu0 %v158
      %181 = vmatprep.subr.mxu0 0.0
      %182 = vmatpush1.msra.mxu0 0.0
      %183 = vmatprep.subr.mxu0 0.0
      %184 = vmatpush1.msra.mxu0 0.0
      %185 = vmatprep.subr.mxu0 0.0
      %186 = vmatpush1.msra.mxu0 0.0
      %187 = vmatprep.subr.mxu0 0.0
      %188 = vmatpush1.msra.mxu0 0.0
      %189 = vmatprep.subr.mxu0 0.0
      %190 = vmatpush1.msra.mxu0 0.0
      %191 = vmatprep.subr.mxu0 0.0
      %192 = vmatpush1.msra.mxu0 0.0
      %193 = vmatprep.subr.mxu0 0.0
      %194 = vmatpush1.msra.mxu0 0.0
      %195 = vmatprep.subr.mxu0 0.0
      %196 = vmatpush1.msra.mxu0 0.0
      %197 = vmatprep.subr.mxu0 0.0
      %198 = vmatpush1.msra.mxu0 0.0
      %199 = vmatprep.subr.mxu0 0.0
      %200 = vmatpush1.msra.mxu0 0.0
      %201 = vmatprep.subr.mxu0 0.0
      %202 = vmatpush1.msra.mxu0 0.0
      %203 = vmatprep.subr.mxu0 0.0
      %204 = vmatpush1.msra.mxu0 0.0
      %205 = vmatprep.subr.mxu0 0.0
      %206 = vmatpush1.msra.mxu0 0.0
      %207 = vmatprep.subr.mxu0 0.0
      %208 = vmatpush1.msra.mxu0 0.0
      %209 = vmatprep.subr.mxu0 0.0
      %210 = vmatpush1.msra.mxu0 0.0
      %211 = vmatprep.subr.mxu0 0.0
      %212 = vmatpush1.msra.mxu0 0.0
      %213 = vmatprep.subr.mxu0 0.0
      %214 = vmatpush1.msra.mxu0 0.0
      %215 = vmatprep.subr.mxu0 0.0
      %216 = vmatpush1.msra.mxu0 0.0
      %217 = vmatprep.subr.mxu0 0.0
      %218 = vmatpush1.msra.mxu0 0.0
      %219 = vmatprep.subr.mxu0 0.0
      %220 = vmatpush1.msra.mxu0 0.0
      %221 = vmatprep.subr.mxu0 0.0
      %222 = vmatpush1.msra.mxu0 0.0
      %223 = vmatprep.subr.mxu0 0.0
      %224 = vmatpush1.msra.mxu0 0.0
      %225 = vmatprep.subr.mxu0 0.0
      %226 = vmatpush1.msra.mxu0 0.0
      %227 = vmatprep.subr.mxu0 0.0
      %228 = vmatpush1.msra.mxu0 0.0
      %229 = vmatprep.mubr.f32.mxu0 0.0
      %230 = vmatmul.mubr.f32.gmra.mrb[0].mxu0 %v163
      %v231 = vpop.f32.mrb[0].mxu0
      %v232 = vadd.f32 0.0, %v231
      %v233 = vpop.f32.mrb[0].mxu0
      %v234 = vadd.f32 0.0, %v233
      %235 = vdwg.mxu0
      %v236 = vadd.f32 %v232, %v234
      %237 = vadd.xlane.f32.xlu0 %v236
      %v238 = vpop.xlane.xlu0 %237
      %v239 = vrcp.pop 256.0
      %v240 = vmul.f32 %v238, %v239
      %v241 = vsub.f32 %v232, %v240
      %v242 = vsub.f32 %v234, %v240
      %v243 = vmul.f32 %v241, %v241
      %v244 = vmul.f32 %v242, %v242
      %v245 = vadd.f32 %v243, %v244
      %246 = vadd.xlane.f32.xlu0 %v245
      %v247 = vpop.xlane.xlu0 %246
      %v248 = vmul.f32 %v247, %v239
      %v249 = vadd.f32 %v248, 1e-05
      %v250 = vrsqrt.pop %v249
      %v251 = vmul.f32 %v249, %v250
      %vm252 = vcmp.eq.f32.partialorder %v249, inf
      %v253 = vsel %vm252, %v249, %v251
      %vm254 = vcmp.eq.f32.partialorder %v249, 0.0
      %v255 = vand.u32 %v249, 2147483648
      %v256 = vsel %vm254, %v255, %v253
      %v257 = vrcp.pop %v256
      %v258 = vmul.f32 %v241, %v257
      %v259 = vmul.f32 %v242, %v257
      %vm260 = vcmp.ge.f32.partialorder %v258, 0.0
      %vm261 = vcmp.ge.f32.partialorder %v259, 0.0
      %v262 = vmul.f32 %v258, 0.2
      %v263 = vmul.f32 %v259, 0.2
      %v264 = vsel %vm260, %v258, %v262
      %v265 = vsel %vm261, %v259, %v263
      %266 = vst [vmem:[%s143] sm:$0xff] %v264
      %267 = vst [vmem:[%s143 + $0x8] sm:$0xff] %v265
      %p268 = scmp.lt.s32.totalorder %s13, 1
      %s269 = scalar_select %p268, %s13, 1
      %s270 = smul.addr %s269, 2
      %s271 = smul.addr %s270, 8
      %s272 = scalar_lea.vmem %s2, %s271
      // Predicated region
      $region29: #{unet_level_forward.13} parent=27 // pred_check
        %p273 = pneg %p78
      $region30: #{unet_level_forward.13} parent=27 // pred_check_branch
        %275 = sbr.rel (%p273) target = $region32
      $region31: #{unet_level_forward.13} parent=27 // pred_region
        _
      $region32: #{unet_level_forward.13} parent=27 // pred_fallthru
        _
    $region28: #{unet_level_forward.13} parent=5 // pred_fallthru
      _
    %p276 = scmp.le.s32.totalorder 2, %s8
    // Predicated region
    $region33: #{unet_level_forward.13} parent=5 // pred_check
      %p277 = pneg %p276
    $region34: #{unet_level_forward.13} parent=5 // pred_check_branch
      %279 = sbr.rel (%p277) target = $region36
    $region35: #{unet_level_forward.13} parent=5 // pred_region
      %s280 = ssub.s32 %s8, 2
      // Predicated region
      $region37: #{unet_level_forward.13} parent=35 // pred_check
        %p281 = pneg %p84
      $region38: #{unet_level_forward.13} parent=35 // pred_check_branch
        %283 = sbr.rel (%p281) target = $region40
      $region39: #{unet_level_forward.13} parent=35 // pred_region
        %p284 = scmp.lt.s32.totalorder %s14, 1
        %s285 = scalar_select %p284, %s14, 1
        %s286 = smul.addr %s285, 2
        %s287 = smul.addr %s286, 8
        %s288 = scalar_lea.vmem %s2, %s287
      $region40: #{unet_level_forward.13} parent=35 // pred_fallthru
        _
    $region36: #{unet_level_forward.13} parent=5 // pred_fallthru
      _
  $region6: #{unet_level_forward.13} parent=0 // loop_footer
    %s12 = sadd.s32 1, %s8
  $region7: #{unet_level_forward.13} parent=0 // loop_footer_branch
    %7 = sbr.rel target = $region3
  $region8: #{unet_level_forward.13} parent=0 // loop_exit
    _

// kernel: unet_level_forward.14
$region0: #{unet_level_forward.14}
  #allocation0 [shape = 'u32[]', space=smem, size = 0x4, offset = 0x4, fixed_abs, tag = 'smem constant byte address 0x4 - core index']
  #allocation1 [shape = 'u32[144,128]{1,0:T(1,128)}', space=vmem, size = 0x12000, scoped, tag = 'internal scratch']
  %s0 = inlined_call_operand.vmem [shape: f32[2,144,256], index: 0, kind: input, shape index: {}]
  %s1 = inlined_call_operand.vmem [shape: f32[8,144], index: 1, kind: input, shape index: {}]
  %s2 = inlined_call_operand.vmem [shape: f32[2,8,256], index: 2, kind: output, shape index: {}]
  %s3 = sld [smem:[#allocation0]]
  $region41: #{unet_level_forward.14} parent=0
    _
  %s5 = ssub.s32 1, %s3
  %s6 = scalar_select 0, %s5, %s3
  loop: start=0, step=1, limit=4
  $region2: #{unet_level_forward.14} parent=0 // loop_pre_header
    _
  $region3: #{unet_level_forward.14} parent=0 // loop_header
    %s8 = sphi 0, %s12
    %p9 = scmp.ge.s32.totalorder %s8, 4
    %s18 = sphi 0, %s20
    %s21 = sphi 0, %s18
    %s22 = sphi 0, %s21
    %s38 = sphi 0, %s22
    %s42 = sphi 0, %s42
    %s44 = sphi 0, %s42
    %s45 = sphi 0, %s44
    %s59 = sphi 0, %s45
    %s65 = sphi 0, %s67
    %s68 = sphi 0, %s65
    %s69 = sphi 0, %s68
    %s85 = sphi 0, %s69
  $region4: #{unet_level_forward.14} parent=0 // loop_header_branch
    %11 = sbr.rel (%p9) target = $region8
  $region5: #{unet_level_forward.14} parent=0 // loop_body
    %s13 = ssub.s32 %s8, 1
    %s14 = ssub.s32 %s8, 2
    %s15 = sadd.s32 %s8, 1
    %s16 = ssub.s32 %s8, %s15
    %p17 = scmp.eq.s32.totalorder %s16, 0
    %s19 = sadd.s32 %s18, 1
    %s20 = scalar_select %p17, %s18, %s19
    %p23 = pneg %p17
    %p24 = scmp.eq.s32.totalorder %s8, 1
    %p25 = por %p23, %p24
    %p26 = scmp.ne.s32.totalorder %s18, %s21
    %p27 = scmp.eq.s32.totalorder %s8, 0
    %p28 = por %p26, %p27
    %p29 = scmp.ne.s32.totalorder %s18, %s21
    %p30 = scmp.eq.s32.totalorder %s13, 1
    %p31 = por %p29, %p30
    %p32 = scmp.ne.s32.totalorder %s21, %s22
    %p33 = scmp.eq.s32.totalorder %s13, 0
    %p34 = por %p32, %p33
    %p35 = scmp.ne.s32.totalorder %s21, %s22
    %p36 = scmp.eq.s32.totalorder %s14, 1
    %p37 = por %p35, %p36
    %p39 = scmp.ne.s32.totalorder %s22, %s38
    %p40 = scmp.eq.s32.totalorder %s14, 0
    %p41 = por %p39, %p40
    %s43 = sadd.s32 %s42, 1
    %p46 = scmp.eq.s32.totalorder %s8, 1
    %p47 = scmp.ne.s32.totalorder %s42, %s44
    %p48 = scmp.eq.s32.totalorder %s8, 0
    %p49 = por %p47, %p48
    %p50 = scmp.ne.s32.totalorder %s42, %s44
    %p51 = scmp.eq.s32.totalorder %s13, 1
    %p52 = por %p50, %p51
    %p53 = scmp.ne.s32.totalorder %s44, %s45
    %p54 = scmp.eq.s32.totalorder %s13, 0
    %p55 = por %p53, %p54
    %p56 = scmp.ne.s32.totalorder %s44, %s45
    %p57 = scmp.eq.s32.totalorder %s14, 1
    %p58 = por %p56, %p57
    %p60 = scmp.ne.s32.totalorder %s45, %s59
    %p61 = scmp.eq.s32.totalorder %s14, 0
    %p62 = por %p60, %p61
    %s63 = ssub.s32 %s8, %s15
    %p64 = scmp.eq.s32.totalorder %s63, 0
    %s66 = sadd.s32 %s65, 1
    %s67 = scalar_select %p64, %s65, %s66
    %p70 = pneg %p64
    %p71 = scmp.eq.s32.totalorder %s8, 1
    %p72 = por %p70, %p71
    %p73 = scmp.ne.s32.totalorder %s65, %s68
    %p74 = scmp.eq.s32.totalorder %s8, 0
    %p75 = por %p73, %p74
    %p76 = scmp.ne.s32.totalorder %s65, %s68
    %p77 = scmp.eq.s32.totalorder %s13, 1
    %p78 = por %p76, %p77
    %p79 = scmp.ne.s32.totalorder %s68, %s69
    %p80 = scmp.eq.s32.totalorder %s13, 0
    %p81 = por %p79, %p80
    %p82 = scmp.ne.s32.totalorder %s68, %s69
    %p83 = scmp.eq.s32.totalorder %s14, 1
    %p84 = por %p82, %p83
    %p86 = scmp.ne.s32.totalorder %s69, %s85
    %p87 = scmp.eq.s32.totalorder %s14, 0
    %p88 = por %p86, %p87
    %p89 = scmp.le.s32.totalorder 1, %s8
    %p90 = scmp.lt.s32.totalorder %s8, 3
    %p91 = pnand %p89, %p90
    %p92 = pneg %p91
    // Predicated region
    $region9: #{unet_level_forward.14} parent=5 // pred_check
      _
    $region10: #{unet_level_forward.14} parent=5 // pred_check_branch
      %94 = sbr.rel (%p91) target = $region12
    $region11: #{unet_level_forward.14} parent=5 // pred_region
      %s95 = ssub.s32 %s8, 1
      // Predicated region
      $region13: #{unet_level_forward.14} parent=11 // pred_check
        %p96 = pneg %p55
      $region14: #{unet_level_forward.14} parent=11 // pred_check_branch
        %98 = sbr.rel (%p96) target = $region16
      $region15: #{unet_level_forward.14} parent=11 // pred_region
        _
      $region16: #{unet_level_forward.14} parent=11 // pred_fallthru
        _
    $region12: #{unet_level_forward.14} parent=5 // pred_fallthru
      _
    %p99 = scmp.lt.s32.totalorder %s8, 2
    // Predicated region
    $region17: #{unet_level_forward.14} parent=5 // pred_check
      %p100 = pneg %p99
    $region18: #{unet_level_forward.14} parent=5 // pred_check_branch
      %102 = sbr.rel (%p100) target = $region20
    $region19: #{unet_level_forward.14} parent=5 // pred_region
      // Predicated region
      $region21: #{unet_level_forward.14} parent=19 // pred_check
        %p103 = pneg %p28
      $region22: #{unet_level_forward.14} parent=19 // pred_check_branch
        %105 = sbr.rel (%p103) target = $region24
      $region23: #{unet_level_forward.14} parent=19 // pred_region
        %p106 = scmp.lt.s32.totalorder %s8, 1
        %s107 = scalar_select %p106, %s8, 1
        %s108 = smul.addr %s107, 36
        %s109 = smul.addr %s108, 8
        %s110 = scalar_lea.vmem %s0, %s109
      $region24: #{unet_level_forward.14} parent=19 // pred_fallthru
        _
    $region20: #{unet_level_forward.14} parent=5 // pred_fallthru
      _
    %p111 = scmp.le.s32.totalorder 1, %s8
    %p112 = scmp.lt.s32.totalorder %s8, 3
    %p113 = pnand %p111, %p112
    %p114 = pneg %p113
    // Predicated region
    $region25: #{unet_level_forward.14} parent=5 // pred_check
      _
    $region26: #{unet_level_forward.14} parent=5 // pred_check_branch
      %116 = sbr.rel (%p113) target = $region28
    $region27: #{unet_level_forward.14} parent=5 // pred_region
      %s117 = ssub.s32 %s8, 1
      %p118 = scmp.lt.s32.totalorder %s13, 1
      %s119 = scalar_select %p118, %s13, 1
      %s120 = smul.addr %s119, 36
      %s121 = smul.addr %s120, 8
      %s122 = scalar_lea.vmem %s0, %s121
      %p123 = pneg %p34
      %p124 = pneg %p31
      %p125 = pneg %p55
      %p126 = pneg %p52
      %p127 = pneg %p81
      %p128 = pneg %p78
      %p129 = scmp.lt.s32.totalorder %s13, 1
      %s130 = scalar_select %p129, %s13, 1
      %s131 = smul.addr %s130, 2
      %s132 = smul.addr %s131, 8
      %s133 = scalar_lea.vmem %s2, %s132
      %p134 = scmp.lt.s32.totalorder %s13, 1
      %s135 = scalar_select %p134, %s13, 1
      %s136 = smul.addr %s135, 36
      %s137 = smul.addr %s136, 8
      %s138 = scalar_lea.vmem %s0, %s137
      %p139 = scmp.lt.s32.totalorder %s13, 1
      %s140 = scalar_select %p139, %s13, 1
      %s141 = smul.addr %s140, 2
      %s142 = smul.addr %s141, 8
      %s143 = scalar_lea.vmem %s2, %s142
      %v144 = vld [vmem:[%s138] sm:$0xff]
      %v145 = vld [vmem:[%s138 + $0x8] sm:$0xff]
      %v146 = vld [vmem:[%s138 + $0x10] sm:$0xff]
      %v147 = vld [vmem:[%s138 + $0x18] sm:$0xff]
      %v148 = vld [vmem:[%s138 + $0x20] sm:$0xff]
      %v149 = vld [vmem:[%s138 + $0x28] sm:$0xff]
      %v150 = vld [vmem:[%s138 + $0x30] sm:$0xff]
      %v151 = vld [vmem:[%s138 + $0x38] sm:$0xff]
      %v152 = vld [vmem:[%s138 + $0x40] sm:$0xff]
      %v153 = vld [vmem:[%s138 + $0x48] sm:$0xff]
      %v154 = vld [vmem:[%s138 + $0x50] sm:$0xff]
      %v155 = vld [vmem:[%s138 + $0x58] sm:$0xff]
      %v156 = vld [vmem:[%s138 + $0x60] sm:$0xff]
      %v157 = vld [vmem:[%s138 + $0x68] sm:$0xff]
      %v158 = vld [vmem:[%s138 + $0x70] sm:$0xff]
      %v159 = vld [vmem:[%s138 + $0x78] sm:$0xff]
      %v160 = vld [vmem:[%s138 + $0x80] sm:$0xff]
      %v161 = vld [vmem:[%s138 + $0x88] sm:$0xff]
      %v162 = vld [vmem:[%s138 + $0x90] sm:$0xff]
      %v163 = vld [vmem:[%s138 + $0x98] sm:$0xff]
      %v164 = vld [vmem:[%s138 + $0xa0] sm:$0xff]
      %v165 = vld [vmem:[%s138 + $0xa8] sm:$0xff]
      %v166 = vld [vmem:[%s138 + $0xb0] sm:$0xff]
      %v167 = vld [vmem:[%s138 + $0xb8] sm:$0xff]
      %v168 = vld [vmem:[%s138 + $0xc0] sm:$0xff]
      %v169 = vld [vmem:[%s138 + $0xc8] sm:$0xff]
      %v170 = vld [vmem:[%s138 + $0xd0] sm:$0xff]
      %v171 = vld [vmem:[%s138 + $0xd8] sm:$0xff]
      %v172 = vld [vmem:[%s138 + $0xe0] sm:$0xff]
      %v173 = vld [vmem:[%s138 + $0xe8] sm:$0xff]
      %v174 = vld [vmem:[%s138 + $0xf0] sm:$0xff]
      %v175 = vld [vmem:[%s138 + $0xf8] sm:$0xff]
      %v176 = vld [vmem:[%s138 + $0x100] sm:$0xff]
      %v177 = vld [vmem:[%s138 + $0x108] sm:$0xff]
      %v178 = vld [vmem:[%s138 + $0x110] sm:$0xff]
      %v179 = vld [vmem:[%s138 + $0x118] sm:$0xff]
      %v180 = vld [vmem:[%s1] sm:$0xff]
      %v181 = vld [vmem:[%s1 + $0x8] sm:$0xff]
      %vm182 = vcmask 130048
      %v184 = vsel %vm182, %v181, 0
      %186 = vmatprep.subr.mxu0 %v145
      %187 = vmatpush1.msra.mxu0 %v144
      %188 = vmatprep.subr.mxu0 %v147
      %189 = vmatpush1.msra.mxu0 %v146
      %190 = vmatprep.subr.mxu0 %v149
      %191 = vmatpush1.msra.mxu0 %v148
      %192 = vmatprep.subr.mxu0 %v151
      %193 = vmatpush1.msra.mxu0 %v150
      %194 = vmatprep.subr.mxu0 %v153
      %195 = vmatpush1.msra.mxu0 %v152
      %196 = vmatprep.subr.mxu0 %v155
      %197 = vmatpush1.msra.mxu0 %v154
      %198 = vmatprep.subr.mxu0 %v157
      %199 = vmatpush1.msra.mxu0 %v156
      %200 = vmatprep.subr.mxu0 %v159
      %201 = vmatpush1.msra.mxu0 %v158
      %202 = vmatprep.subr.mxu0 %v161
      %203 = vmatpush1.msra.mxu0 %v160
      %204 = vmatprep.subr.mxu0 %v163
      %205 = vmatpush1.msra.mxu0 %v162
      %206 = vmatprep.subr.mxu0 %v165
      %207 = vmatpush1.msra.mxu0 %v164
      %208 = vmatprep.subr.mxu0 %v167
      %209 = vmatpush1.msra.mxu0 %v166
      %210 = vmatprep.subr.mxu0 %v169
      %211 = vmatpush1.msra.mxu0 %v168
      %212 = vmatprep.subr.mxu0 %v171
      %213 = vmatpush1.msra.mxu0 %v170
      %214 = vmatprep.subr.mxu0 %v173
      %215 = vmatpush1.msra.mxu0 %v172
      %216 = vmatprep.subr.mxu0 %v175
      %217 = vmatpush1.msra.mxu0 %v174
      %218 = vmatprep.subr.mxu0 %v177
      %219 = vmatpush1.msra.mxu0 %v176
      %220 = vmatprep.subr.mxu0 %v179
      %221 = vmatpush1.msra.mxu0 %v178
      %222 = vmatprep.subr.mxu0 0.0
      %223 = vmatpush1.msra.mxu0 0.0
      %224 = vmatprep.subr.mxu0 0.0
      %225 = vmatpush1.msra.mxu0 0.0
      %226 = vmatprep.subr.mxu0 0.0
      %227 = vmatpush1.msra.mxu0 0.0
      %228 = vmatprep.subr.mxu0 0.0
      %229 = vmatpush1.msra.mxu0 0.0
      %230 = vmatprep.subr.mxu0 0.0
      %231 = vmatpush1.msra.mxu0 0.0
      %232 = vmatprep.subr.mxu0 0.0
      %233 = vmatpush1.msra.mxu0 0.0
      %234 = vmatprep.subr.mxu0 0.0
      %235 = vmatpush1.msra.mxu0 0.0
      %236 = vmatprep.subr.mxu0 0.0
      %237 = vmatpush1.msra.mxu0 0.0
      %238 = vmatprep.subr.mxu0 0.0
      %239 = vmatpush1.msra.mxu0 0.0
      %240 = vmatprep.subr.mxu0 0.0
      %241 = vmatpush1.msra.mxu0 0.0
      %242 = vmatprep.subr.mxu0 0.0
      %243 = vmatpush1.msra.mxu0 0.0
      %244 = vmatprep.subr.mxu0 0.0
      %245 = vmatpush1.msra.mxu0 0.0
      %246 = vmatprep.subr.mxu0 0.0
      %247 = vmatpush1.msra.mxu0 0.0
      %248 = vmatprep.subr.mxu0 0.0
      %249 = vmatpush1.msra.mxu0 0.0
      %250 = vmatprep.mubr.f32.mxu0 %v184
      %251 = vmatmul.mubr.f32.gmra.mrb[0].mxu0 %v180
      %v252 = vpop.f32.mrb[0].mxu0
      %v253 = vadd.f32 0.0, %v252
      %v254 = vpop.f32.mrb[0].mxu0
      %v255 = vadd.f32 0.0, %v254
      %256 = vdwg.mxu0
      %v257 = vadd.f32 %v253, %v255
      %258 = vadd.xlane.f32.xlu0 %v257
      %v259 = vpop.xlane.xlu0 %258
      %v260 = vrcp.pop 256.0
      %v261 = vmul.f32 %v259, %v260
      %v262 = vsub.f32 %v253, %v261
      %v263 = vsub.f32 %v255, %v261
      %v264 = vmul.f32 %v262, %v262
      %v265 = vmul.f32 %v263, %v263
      %v266 = vadd.f32 %v264, %v265
      %267 = vadd.xlane.f32.xlu0 %v266
      %v268 = vpop.xlane.xlu0 %267
      %v269 = vmul.f32 %v268, %v260
      %v270 = vadd.f32 %v269, 1e-05
      %v271 = vrsqrt.pop %v270
      %v272 = vmul.f32 %v270, %v271
      %vm273 = vcmp.eq.f32.partialorder %v270, inf
      %v274 = vsel %vm273, %v270, %v272
      %vm275 = vcmp.eq.f32.partialorder %v270, 0.0
      %v276 = vand.u32 %v270, 2147483648
      %v277 = vsel %vm275, %v276, %v274
      %v278 = vrcp.pop %v277
      %v279 = vmul.f32 %v262, %v278
      %v280 = vmul.f32 %v263, %v278
      %vm281 = vcmp.ge.f32.partialorder %v279, 0.0
      %vm282 = vcmp.ge.f32.partialorder %v280, 0.0
      %v283 = vmul.f32 %v279, 0.2
      %v284 = vmul.f32 %v280, 0.2
      %v285 = vsel %vm281, %v279, %v283
      %v286 = vsel %vm282, %v280, %v284
      %287 = vst [vmem:[%s143] sm:$0xff] %v285
      %288 = vst [vmem:[%s143 + $0x8] sm:$0xff] %v286
      %p289 = scmp.lt.s32.totalorder %s13, 1
      %s290 = scalar_select %p289, %s13, 1
      %s291 = smul.addr %s290, 2
      %s292 = smul.addr %s291, 8
      %s293 = scalar_lea.vmem %s2, %s292
      // Predicated region
      $region29: #{unet_level_forward.14} parent=27 // pred_check
        %p294 = pneg %p78
      $region30: #{unet_level_forward.14} parent=27 // pred_check_branch
        %296 = sbr.rel (%p294) target = $region32
      $region31: #{unet_level_forward.14} parent=27 // pred_region
        _
      $region32: #{unet_level_forward.14} parent=27 // pred_fallthru
        _
    $region28: #{unet_level_forward.14} parent=5 // pred_fallthru
      _
    %p297 = scmp.le.s32.totalorder 2, %s8
    // Predicated region
    $region33: #{unet_level_forward.14} parent=5 // pred_check
      %p298 = pneg %p297
    $region34: #{unet_level_forward.14} parent=5 // pred_check_branch
      %300 = sbr.rel (%p298) target = $region36
    $region35: #{unet_level_forward.14} parent=5 // pred_region
      %s301 = ssub.s32 %s8, 2
      // Predicated region
      $region37: #{unet_level_forward.14} parent=35 // pred_check
        %p302 = pneg %p84
      $region38: #{unet_level_forward.14} parent=35 // pred_check_branch
        %304 = sbr.rel (%p302) target = $region40
      $region39: #{unet_level_forward.14} parent=35 // pred_region
        %p305 = scmp.lt.s32.totalorder %s14, 1
        %s306 = scalar_select %p305, %s14, 1
        %s307 = smul.addr %s306, 2
        %s308 = smul.addr %s307, 8
        %s309 = scalar_lea.vmem %s2, %s308
      $region40: #{unet_level_forward.14} parent=35 // pred_fallthru
        _
    $region36: #{unet_level_forward.14} parent=5 // pred_fallthru
      _
  $region6: #{unet_level_forward.14} parent=0 // loop_footer
    %s12 = sadd.s32 1, %s8
  $region7: #{unet_level_forward.14} parent=0 // loop_footer_branch
    %7 = sbr.rel target = $region3
  $region8: #{unet_level_forward.14} parent=0 // loop_exit
    _

</llo_original>
